<compile_context>
chip_gen: v6e
topology: v6e:2x2x1
jax: 0.10.0
libtpu: 0.0.40
codegen_flags: <defaults>
</compile_context>

<pallas_src>
import jax
import jax.numpy as jnp
import numpy as np
from jax import lax
from jax.experimental import pallas as pl
from jax.experimental.pallas import tpu as pltpu


# --------------------------------------------------------------------------- #
# Pallas kernel
# --------------------------------------------------------------------------- #
def birnn_kernel(x_ref,      # (TC, TB, H)  bf16 embedded inputs, one (batch, time) tile
                 wihf_ref,   # (H, 4H)      bf16 forward W_ih^T, gates [i|f|g|o] concat
                 whhf_ref,   # (H, 4H)      bf16 forward W_hh^T, gates [i|f|g|o] concat
                 bf_ref,     # (1, 4H)      f32  forward b_ih + b_hh
                 wihb_ref,   # (H, 3H)      bf16 reverse W_ih^T, gates [i|g|o] concat
                 bb_ref,     # (1, 3H)      f32  reverse b_ih + b_hh (i, g, o)
                 lwf_ref,    # (H, 1)       f32  linear weight, forward half
                 lwb_ref,    # (H, 1)       f32  linear weight, reverse half
                 lb_ref,     # (1, 1)       f32  linear bias
                 out_ref,    # (TB, 1)      f32  sigmoid(logits)
                 gx_ref,     # (TC, TB, 4H) bf16 scratch: hoisted input projection
                 h_ref,      # (TB, H)      f32  scratch: forward hidden carry
                 c_ref):     # (TB, H)      f32  scratch: forward cell carry
    TC, TB, H = x_ref.shape
    H4 = 4 * H
    t_chunk = pl.program_id(1)
    n_chunks = pl.num_programs(1)

    def sig(z):
        # sigmoid via a single EUP tanh (cheaper than exp + reciprocal on the
        # serial critical path): sigmoid(x) = 0.5 * (tanh(0.5*x) + 1)
        return 0.5 * (jnp.tanh(0.5 * z) + 1.0)

    @pl.when(t_chunk == 0)
    def _():
        h_ref[...] = jnp.zeros_like(h_ref)
        c_ref[...] = jnp.zeros_like(c_ref)

    # ---- hoisted fused input projection for this T-chunk: one (TC*TB,H)x(H,4H) ----
    # TB is a multiple of 8, so merging/splitting leading dims is layout-free.
    x2d = x_ref[...].reshape(TC * TB, H)
    gx = jnp.dot(x2d, wihf_ref[...], preferred_element_type=jnp.float32) + bf_ref[...]
    gx_ref[...] = gx.astype(gx_ref.dtype).reshape(TC, TB, H4)

    whh = whhf_ref[...]    # stays in vregs/VMEM across the whole recurrence

    def step(t, carry):
        h, c = carry
        # one fused (TB,H)x(H,4H) MXU dot per step; gates sliced off the 4H result
        gates = gx_ref[t].astype(jnp.float32) + jnp.dot(
            h.astype(jnp.bfloat16), whh, preferred_element_type=jnp.float32)
        i_g = sig(gates[:, 0 * H:1 * H])
        f_g = sig(gates[:, 1 * H:2 * H])
        g_g = jnp.tanh(gates[:, 2 * H:3 * H])
        o_g = sig(gates[:, 3 * H:4 * H])
        c_new = f_g * c + i_g * g_g
        h_new = o_g * jnp.tanh(c_new)
        return h_new, c_new

    h, c = h_ref[...], c_ref[...]
    if TC <= 16:
        # short chunk: full unroll for LLO scheduler visibility
        for t in range(TC):
            h, c = step(t, (h, c))
    else:
        # bound live ranges / code size for longer chunks
        h, c = lax.fori_loop(0, TC, step, (h, c), unroll=8)
    h_ref[...] = h
    c_ref[...] = c

    @pl.when(t_chunk == n_chunks - 1)
    def _():
        # ---- reverse direction: exact single LSTM step from the zero state at T-1 ----
        # h0 = c0 = 0  =>  W_hh_reverse and the reverse forget gate drop out.
        x_last = x_ref[TC - 1]
        gb = (jnp.dot(x_last, wihb_ref[...], preferred_element_type=jnp.float32)
              + bb_ref[...])
        bi = sig(gb[:, 0 * H:1 * H])
        bg = jnp.tanh(gb[:, 1 * H:2 * H])
        bo = sig(gb[:, 2 * H:3 * H])
        h_bwd = bo * jnp.tanh(bi * bg)

        # ---- head: two dots into one f32 accumulator (no lane-dim concat relayout) ----
        logits = (jnp.dot(h, lwf_ref[...], preferred_element_type=jnp.float32)
                  + jnp.dot(h_bwd, lwb_ref[...], preferred_element_type=jnp.float32)
                  + lb_ref[...])
        out_ref[...] = sig(logits)


# --------------------------------------------------------------------------- #
# Parameter packing (PyTorch layout -> fused lane-dense kernel layout)
# --------------------------------------------------------------------------- #
def _pack_kernel_params(p, dtype=jnp.bfloat16):
    H = p["emb"].shape[1]
    lin_w = p["lin_w"]                                   # (1, 2H)

    def cat_gates_T(w, gate_idx):
        # w: (4H, H) PyTorch weight (gate order i, f, g, o)
        # -> (H, len(gate_idx)*H) with per-gate transposed blocks concatenated on lanes
        wg = w.reshape(4, H, H)
        return jnp.concatenate([wg[g].T for g in gate_idx], axis=1)

    b_f = (p["b_ih_f"] + p["b_hh_f"]).reshape(4, H)
    b_b = (p["b_ih_b"] + p["b_hh_b"]).reshape(4, H)

    return {
        "wih_f": cat_gates_T(p["w_ih_f"], (0, 1, 2, 3)).astype(dtype),   # (H, 4H)
        "whh_f": cat_gates_T(p["w_hh_f"], (0, 1, 2, 3)).astype(dtype),   # (H, 4H)
        "b_f":   b_f.reshape(1, 4 * H).astype(jnp.float32),              # (1, 4H)
        # reverse direction only needs gates (i, g, o) for the single zero-state step
        "wih_b": cat_gates_T(p["w_ih_b"], (0, 2, 3)).astype(dtype),      # (H, 3H)
        "b_b":   jnp.concatenate([b_b[0], b_b[2], b_b[3]]
                                 ).reshape(1, 3 * H).astype(jnp.float32),
        "lw_f":  lin_w[:, :H].T.astype(jnp.float32),                     # (H, 1)
        "lw_b":  lin_w[:, H:].T.astype(jnp.float32),                     # (H, 1)
        "lin_b": p["lin_b"].reshape(1, 1).astype(jnp.float32),
    }


def _round_up(x, m):
    return ((x + m - 1) // m) * m


# --------------------------------------------------------------------------- #
# Wrapper
# --------------------------------------------------------------------------- #
def birnn_forward(tokens, params, batch_tile=None, t_chunk=64):
    """tokens: (B, T) int32.  Returns (B,) float32 (matches y.squeeze())."""
    emb = params["emb"]                                  # (V, H), row 0 zeros (padding_idx)
    H = emb.shape[1]
    B, T = tokens.shape

    # ---- device-aware tiling / VMEM sizing ----
    try:
        kind = jax.devices()[0].device_kind.lower()
    except Exception:
        kind = ""
    if batch_tile is None:
        # 256-row LHS matches the 256-wide MXUs on v6e/v7x; keep 128 on v5e (4x128 MXU)
        batch_tile = 128 if ("v5 lite" in kind or "v5e" in kind) else 256
    try:
        vmem_cap = getattr(pltpu.get_tpu_info(), "vmem_capacity_bytes",
                           128 * 1024 * 1024)
    except Exception:
        vmem_cap = 64 * 1024 * 1024
    vmem_limit = min(int(vmem_cap * 3 // 4), 112 * 1024 * 1024)

    # ---- embedding lookup, gathered directly into time-major (T, B, H), bf16 ----
    x_tbh = jnp.take(emb, tokens.T, axis=0).astype(jnp.bfloat16)   # (T, B, H)

    # ---- batch tiling: pad to sublanes; keep >= 2 tiles when possible (v7x megacore) ----
    B8 = _round_up(B, 8)
    if B8 <= batch_tile:
        if B8 >= 16:
            TB = _round_up(pl.cdiv(B8, 2), 8)
            B_pad = 2 * TB
        else:
            TB, B_pad = B8, B8
    else:
        TB = batch_tile
        B_pad = _round_up(B, TB)
    if B_pad != B:
        x_tbh = jnp.pad(x_tbh, ((0, 0), (0, B_pad - B), (0, 0)))

    # ---- time chunking: largest divisor of T <= t_chunk (streamed via the grid) ----
    TC = max(d for d in range(1, min(T, t_chunk) + 1) if T % d == 0)
    if TC < 8 and T <= 256:
        TC = T          # prime-ish small T: keep it resident instead of tiny chunks

    kp = _pack_kernel_params(params)
    grid = (B_pad // TB, T // TC)

    out = pl.pallas_call(
        birnn_kernel,
        out_shape=jax.ShapeDtypeStruct((B_pad, 1), jnp.float32),
        grid_spec=pltpu.PrefetchScalarGridSpec(
            num_scalar_prefetch=0,
            grid=grid,
            in_specs=[
                pl.BlockSpec((TC, TB, H), lambda i, t: (t, i, 0)),   # x: (batch, time) tiled
                pl.BlockSpec((H, 4 * H), lambda i, t: (0, 0)),       # wih_f (VMEM-resident)
                pl.BlockSpec((H, 4 * H), lambda i, t: (0, 0)),       # whh_f
                pl.BlockSpec((1, 4 * H), lambda i, t: (0, 0)),       # b_f
                pl.BlockSpec((H, 3 * H), lambda i, t: (0, 0)),       # wih_b (i,g,o only)
                pl.BlockSpec((1, 3 * H), lambda i, t: (0, 0)),       # b_b
                pl.BlockSpec((H, 1), lambda i, t: (0, 0)),           # lin_w (fwd half)
                pl.BlockSpec((H, 1), lambda i, t: (0, 0)),           # lin_w (bwd half)
                pl.BlockSpec((1, 1), lambda i, t: (0, 0)),           # lin_b
            ],
            out_specs=pl.BlockSpec((TB, 1), lambda i, t: (i, 0)),
            scratch_shapes=[
                pltpu.VMEM((TC, TB, 4 * H), jnp.bfloat16),           # fused gate scratch
                pltpu.VMEM((TB, H), jnp.float32),                    # h carry
                pltpu.VMEM((TB, H), jnp.float32),                    # c carry
            ],
        ),
        compiler_params=pltpu.CompilerParams(
            dimension_semantics=("parallel", "arbitrary"),           # batch ∥, time serial
            vmem_limit_bytes=vmem_limit,
        ),
    )(x_tbh,
      kp["wih_f"], kp["whh_f"], kp["b_f"],
      kp["wih_b"], kp["b_b"],
      kp["lw_f"], kp["lw_b"], kp["lin_b"])

    return jnp.squeeze(out[:B], axis=-1)                            # (B,)


# --------------------------------------------------------------------------- #
# Deterministic parameter construction (shapes from BiRNN.__init__, PyTorch layout)
# --------------------------------------------------------------------------- #
def make_params(key, num_words, hidden_dim):
    H = hidden_dim
    ks = jax.random.split(key, 8)

    emb = 0.1 * jax.random.normal(ks[0], (num_words, H), jnp.float32)
    emb = emb.at[0].set(0.0)                                        # padding_idx=0

    def lstm_dir(k):
        k1, k2, k3, k4 = jax.random.split(k, 4)
        w_ih = 0.1 * jax.random.normal(k1, (4 * H, H), jnp.float32)   # weight_ih_l0
        w_hh = 0.1 * jax.random.normal(k2, (4 * H, H), jnp.float32)   # weight_hh_l0
        b_ih = 0.1 * jax.random.normal(k3, (4 * H,), jnp.float32)
        b_hh = 0.1 * jax.random.normal(k4, (4 * H,), jnp.float32)
        return w_ih, w_hh, b_ih, b_hh

    w_ih_f, w_hh_f, b_ih_f, b_hh_f = lstm_dir(ks[1])
    w_ih_b, w_hh_b, b_ih_b, b_hh_b = lstm_dir(ks[2])

    lin_w = 0.1 * jax.random.normal(ks[3], (1, 2 * H), jnp.float32)   # nn.Linear(2H,1).weight
    lin_b = 0.1 * jax.random.normal(ks[4], (1,), jnp.float32)

    return dict(emb=emb,
                w_ih_f=w_ih_f, w_hh_f=w_hh_f, b_ih_f=b_ih_f, b_hh_f=b_hh_f,
                w_ih_b=w_ih_b, w_hh_b=w_hh_b, b_ih_b=b_ih_b, b_hh_b=b_hh_b,
                lin_w=lin_w, lin_b=lin_b)


# --------------------------------------------------------------------------- #
# Pure-JAX f32 reference (full bidirectional LSTM, mirrors PyTorch nn.LSTM semantics)
# --------------------------------------------------------------------------- #
def birnn_reference(tokens, params):
    emb = params["emb"]
    H = emb.shape[1]
    x = jnp.take(emb, tokens, axis=0)                               # (B, T, H)
    B, T, _ = x.shape
    x_tbh = jnp.transpose(x, (1, 0, 2))                             # (T, B, H)

    def run_dir(xs, w_ih, w_hh, b_ih, b_hh):
        wih, whh = w_ih.T, w_hh.T
        b = (b_ih + b_hh)[None, :]

        def step(carry, x_t):
            h, c = carry
            gates = x_t @ wih + h @ whh + b
            i = jax.nn.sigmoid(gates[:, 0 * H:1 * H])
            f = jax.nn.sigmoid(gates[:, 1 * H:2 * H])
            g = jnp.tanh(gates[:, 2 * H:3 * H])
            o = jax.nn.sigmoid(gates[:, 3 * H:4 * H])
            c = f * c + i * g
            h = o * jnp.tanh(c)
            return (h, c), h

        zero = jnp.zeros((B, H), jnp.float32)
        (_, _), hs = lax.scan(step, (zero, zero), xs)
        return hs                                                   # (T, B, H)

    hs_f = run_dir(x_tbh, params["w_ih_f"], params["w_hh_f"],
                   params["b_ih_f"], params["b_hh_f"])
    hs_b = run_dir(x_tbh[::-1], params["w_ih_b"], params["w_hh_b"],
                   params["b_ih_b"], params["b_hh_b"])
    hs_b = hs_b[::-1]                                               # back to original order
    out_last = jnp.concatenate([hs_f[-1], hs_b[-1]], axis=-1)       # lstm output[:, -1]
    logits = out_last @ params["lin_w"].T + params["lin_b"]
    return jnp.squeeze(jax.nn.sigmoid(logits), axis=-1)


# --------------------------------------------------------------------------- #
if __name__ == "__main__":
    num_words, hidden_dim = 100, 32
    batch, seq = 2, 8

    key = jax.random.PRNGKey(0)
    k_tok, k_par = jax.random.split(key)
    tokens = jax.random.randint(k_tok, (batch, seq), 0, num_words, dtype=jnp.int32)
    params = make_params(k_par, num_words, hidden_dim)

    y = birnn_forward(tokens, params)
    y = jax.block_until_ready(y)

    # bf16 weight/activation storage (f32 accumulation) -> loosened tolerance vs f32 ref
    y_ref = birnn_reference(tokens, params)
    np.testing.assert_allclose(np.asarray(y), np.asarray(y_ref), rtol=2e-2, atol=2e-2)

    print("KERNEL_OK")
</pallas_src>

<mosaic_0001>
module attributes {stable_mosaic.version = 11 : i64} {
  func.func @birnn_kernel(%arg0: i32, %arg1: i32, %arg2: memref<8x8x32xbf16, #tpu.memory_space<vmem>>, %arg3: memref<32x128xbf16, #tpu.memory_space<vmem>>, %arg4: memref<32x128xbf16, #tpu.memory_space<vmem>>, %arg5: memref<1x128xf32, #tpu.memory_space<vmem>>, %arg6: memref<32x96xbf16, #tpu.memory_space<vmem>>, %arg7: memref<1x96xf32, #tpu.memory_space<vmem>>, %arg8: memref<32x1xf32, #tpu.memory_space<vmem>>, %arg9: memref<32x1xf32, #tpu.memory_space<vmem>>, %arg10: memref<1x1xf32, #tpu.memory_space<vmem>>, %arg11: memref<8x1xf32, #tpu.memory_space<vmem>>, %arg12: memref<8x8x128xbf16, #tpu.memory_space<vmem>>, %arg13: memref<8x32xf32, #tpu.memory_space<vmem>>, %arg14: memref<8x32xf32, #tpu.memory_space<vmem>>) attributes {dimension_semantics = [#tpu.dimension_semantics<parallel>, #tpu.dimension_semantics<arbitrary>], iteration_bounds = array<i64: 1, 1>, scalar_prefetch = 0 : i64, scratch_operands = 3 : i64, tpu.core_type = #tpu.core_type<tc>, window_params = [{transform_indices = @transform_0, window_bounds = array<i64: 8, 8, 32>}, {pipeline_mode = #tpu.pipeline_mode<synchronous>, transform_indices = @transform_1, window_bounds = array<i64: 32, 128>}, {pipeline_mode = #tpu.pipeline_mode<synchronous>, transform_indices = @transform_2, window_bounds = array<i64: 32, 128>}, {pipeline_mode = #tpu.pipeline_mode<synchronous>, transform_indices = @transform_3, window_bounds = array<i64: 1, 128>}, {pipeline_mode = #tpu.pipeline_mode<synchronous>, transform_indices = @transform_4, window_bounds = array<i64: 32, 96>}, {pipeline_mode = #tpu.pipeline_mode<synchronous>, transform_indices = @transform_5, window_bounds = array<i64: 1, 96>}, {pipeline_mode = #tpu.pipeline_mode<synchronous>, transform_indices = @transform_6, window_bounds = array<i64: 32, 1>}, {pipeline_mode = #tpu.pipeline_mode<synchronous>, transform_indices = @transform_7, window_bounds = array<i64: 32, 1>}, {pipeline_mode = #tpu.pipeline_mode<synchronous>, transform_indices = @transform_8, window_bounds = array<i64: 1, 1>}, {transform_indices = @transform_9, window_bounds = array<i64: 8, 1>}]} {
    %c0_i32 = arith.constant 0 : i32
    %0 = arith.cmpi eq, %arg1, %c0_i32 : i32
    %1 = arith.extui %0 : i1 to i32
    %c0_i32_0 = arith.constant 0 : i32
    %2 = arith.cmpi ne, %1, %c0_i32_0 : i32
    scf.if %2 {
      %cst_119 = arith.constant 0.000000e+00 : f32
      %317 = vector.broadcast %cst_119 : f32 to vector<8x32xf32>
      %c0_120 = arith.constant 0 : index
      %c0_121 = arith.constant 0 : index
      %318 = vector.load %arg13[%c0_120, %c0_121] : memref<8x32xf32, #tpu.memory_space<vmem>>, vector<8x32xf32>
      tpu.vector_store %arg13[%c0_120, %c0_121], %317 {strides = array<i32>} : memref<8x32xf32, #tpu.memory_space<vmem>>, vector<8x32xf32>,
      %cst_122 = arith.constant 0.000000e+00 : f32
      %319 = vector.broadcast %cst_122 : f32 to vector<8x32xf32>
      %c0_123 = arith.constant 0 : index
      %c0_124 = arith.constant 0 : index
      %320 = vector.load %arg14[%c0_123, %c0_124] : memref<8x32xf32, #tpu.memory_space<vmem>>, vector<8x32xf32>
      tpu.vector_store %arg14[%c0_123, %c0_124], %319 {strides = array<i32>} : memref<8x32xf32, #tpu.memory_space<vmem>>, vector<8x32xf32>,
    } else {
    }
    %c0 = arith.constant 0 : index
    %c0_1 = arith.constant 0 : index
    %c0_2 = arith.constant 0 : index
    %3 = vector.load %arg2[%c0, %c0_1, %c0_2] : memref<8x8x32xbf16, #tpu.memory_space<vmem>>, vector<8x8x32xbf16>
    %4 = vector.shape_cast %3 : vector<8x8x32xbf16> to vector<64x32xbf16>
    %c0_3 = arith.constant 0 : index
    %c0_4 = arith.constant 0 : index
    %5 = vector.load %arg3[%c0_3, %c0_4] : memref<32x128xbf16, #tpu.memory_space<vmem>>, vector<32x128xbf16>
    %cst = arith.constant dense<0.000000e+00> : vector<64x128xf32>
    %6 = tpu.matmul %4, %5, %cst {dimension_numbers = #tpu.dot_dimension_numbers<[1], [0], [0], [1], [0, 0, 1, 1], [], []>} : vector<64x32xbf16>, vector<32x128xbf16>, vector<64x128xf32> -> vector<64x128xf32>
    %c0_5 = arith.constant 0 : index
    %c0_6 = arith.constant 0 : index
    %7 = vector.load %arg5[%c0_5, %c0_6] : memref<1x128xf32, #tpu.memory_space<vmem>>, vector<1x128xf32>
    %8 = vector.broadcast %7 : vector<1x128xf32> to vector<64x128xf32>
    %9 = arith.addf %6, %8 : vector<64x128xf32>
    %10 = arith.truncf %9 : vector<64x128xf32> to vector<64x128xbf16>
    %11 = vector.shape_cast %10 : vector<64x128xbf16> to vector<8x8x128xbf16>
    %c0_7 = arith.constant 0 : index
    %c0_8 = arith.constant 0 : index
    %c0_9 = arith.constant 0 : index
    %12 = vector.load %arg12[%c0_7, %c0_8, %c0_9] : memref<8x8x128xbf16, #tpu.memory_space<vmem>>, vector<8x8x128xbf16>
    tpu.vector_store %arg12[%c0_7, %c0_8, %c0_9], %11 {strides = array<i32>} : memref<8x8x128xbf16, #tpu.memory_space<vmem>>, vector<8x8x128xbf16>,
    %c0_10 = arith.constant 0 : index
    %c0_11 = arith.constant 0 : index
    %13 = vector.load %arg4[%c0_10, %c0_11] : memref<32x128xbf16, #tpu.memory_space<vmem>>, vector<32x128xbf16>
    %c0_12 = arith.constant 0 : index
    %c0_13 = arith.constant 0 : index
    %14 = vector.load %arg13[%c0_12, %c0_13] : memref<8x32xf32, #tpu.memory_space<vmem>>, vector<8x32xf32>
    %c0_14 = arith.constant 0 : index
    %c0_15 = arith.constant 0 : index
    %15 = vector.load %arg14[%c0_14, %c0_15] : memref<8x32xf32, #tpu.memory_space<vmem>>, vector<8x32xf32>
    %c0_16 = arith.constant 0 : index
    %c0_17 = arith.constant 0 : index
    %c0_18 = arith.constant 0 : index
    %16 = vector.load %arg12[%c0_16, %c0_17, %c0_18] : memref<8x8x128xbf16, #tpu.memory_space<vmem>>, vector<1x8x128xbf16>
    %17 = vector.shape_cast %16 : vector<1x8x128xbf16> to vector<8x128xbf16>
    %18 = arith.extf %17 : vector<8x128xbf16> to vector<8x128xf32>
    %19 = arith.truncf %14 : vector<8x32xf32> to vector<8x32xbf16>
    %cst_19 = arith.constant dense<0.000000e+00> : vector<8x128xf32>
    %20 = tpu.matmul %19, %13, %cst_19 {dimension_numbers = #tpu.dot_dimension_numbers<[1], [0], [0], [1], [0, 0, 1, 1], [], []>} : vector<8x32xbf16>, vector<32x128xbf16>, vector<8x128xf32> -> vector<8x128xf32>
    %21 = arith.addf %18, %20 : vector<8x128xf32>
    %22 = vector.extract_strided_slice %21 {offsets = [0, 0], sizes = [8, 32], strides = [1, 1]} : vector<8x128xf32> to vector<8x32xf32>
    %cst_20 = arith.constant 5.000000e-01 : f32
    %23 = vector.broadcast %cst_20 : f32 to vector<8x32xf32>
    %24 = arith.mulf %23, %22 : vector<8x32xf32>
    %25 = math.tanh %24 : vector<8x32xf32>
    %cst_21 = arith.constant 1.000000e+00 : f32
    %26 = vector.broadcast %cst_21 : f32 to vector<8x32xf32>
    %27 = arith.addf %25, %26 : vector<8x32xf32>
    %cst_22 = arith.constant 5.000000e-01 : f32
    %28 = vector.broadcast %cst_22 : f32 to vector<8x32xf32>
    %29 = arith.mulf %28, %27 : vector<8x32xf32>
    %30 = vector.extract_strided_slice %21 {offsets = [0, 32], sizes = [8, 32], strides = [1, 1]} : vector<8x128xf32> to vector<8x32xf32>
    %cst_23 = arith.constant 5.000000e-01 : f32
    %31 = vector.broadcast %cst_23 : f32 to vector<8x32xf32>
    %32 = arith.mulf %31, %30 : vector<8x32xf32>
    %33 = math.tanh %32 : vector<8x32xf32>
    %cst_24 = arith.constant 1.000000e+00 : f32
    %34 = vector.broadcast %cst_24 : f32 to vector<8x32xf32>
    %35 = arith.addf %33, %34 : vector<8x32xf32>
    %cst_25 = arith.constant 5.000000e-01 : f32
    %36 = vector.broadcast %cst_25 : f32 to vector<8x32xf32>
    %37 = arith.mulf %36, %35 : vector<8x32xf32>
    %38 = vector.extract_strided_slice %21 {offsets = [0, 64], sizes = [8, 32], strides = [1, 1]} : vector<8x128xf32> to vector<8x32xf32>
    %39 = math.tanh %38 : vector<8x32xf32>
    %40 = vector.extract_strided_slice %21 {offsets = [0, 96], sizes = [8, 32], strides = [1, 1]} : vector<8x128xf32> to vector<8x32xf32>
    %cst_26 = arith.constant 5.000000e-01 : f32
    %41 = vector.broadcast %cst_26 : f32 to vector<8x32xf32>
    %42 = arith.mulf %41, %40 : vector<8x32xf32>
    %43 = math.tanh %42 : vector<8x32xf32>
    %cst_27 = arith.constant 1.000000e+00 : f32
    %44 = vector.broadcast %cst_27 : f32 to vector<8x32xf32>
    %45 = arith.addf %43, %44 : vector<8x32xf32>
    %cst_28 = arith.constant 5.000000e-01 : f32
    %46 = vector.broadcast %cst_28 : f32 to vector<8x32xf32>
    %47 = arith.mulf %46, %45 : vector<8x32xf32>
    %48 = arith.mulf %37, %15 : vector<8x32xf32>
    %49 = arith.mulf %29, %39 : vector<8x32xf32>
    %50 = arith.addf %48, %49 : vector<8x32xf32>
    %51 = math.tanh %50 : vector<8x32xf32>
    %52 = arith.mulf %47, %51 : vector<8x32xf32>
    %c1 = arith.constant 1 : index
    %c0_29 = arith.constant 0 : index
    %c0_30 = arith.constant 0 : index
    %53 = vector.load %arg12[%c1, %c0_29, %c0_30] : memref<8x8x128xbf16, #tpu.memory_space<vmem>>, vector<1x8x128xbf16>
    %54 = vector.shape_cast %53 : vector<1x8x128xbf16> to vector<8x128xbf16>
    %55 = arith.extf %54 : vector<8x128xbf16> to vector<8x128xf32>
    %56 = arith.truncf %52 : vector<8x32xf32> to vector<8x32xbf16>
    %cst_31 = arith.constant dense<0.000000e+00> : vector<8x128xf32>
    %57 = tpu.matmul %56, %13, %cst_31 {dimension_numbers = #tpu.dot_dimension_numbers<[1], [0], [0], [1], [0, 0, 1, 1], [], []>} : vector<8x32xbf16>, vector<32x128xbf16>, vector<8x128xf32> -> vector<8x128xf32>
    %58 = arith.addf %55, %57 : vector<8x128xf32>
    %59 = vector.extract_strided_slice %58 {offsets = [0, 0], sizes = [8, 32], strides = [1, 1]} : vector<8x128xf32> to vector<8x32xf32>
    %cst_32 = arith.constant 5.000000e-01 : f32
    %60 = vector.broadcast %cst_32 : f32 to vector<8x32xf32>
    %61 = arith.mulf %60, %59 : vector<8x32xf32>
    %62 = math.tanh %61 : vector<8x32xf32>
    %cst_33 = arith.constant 1.000000e+00 : f32
    %63 = vector.broadcast %cst_33 : f32 to vector<8x32xf32>
    %64 = arith.addf %62, %63 : vector<8x32xf32>
    %cst_34 = arith.constant 5.000000e-01 : f32
    %65 = vector.broadcast %cst_34 : f32 to vector<8x32xf32>
    %66 = arith.mulf %65, %64 : vector<8x32xf32>
    %67 = vector.extract_strided_slice %58 {offsets = [0, 32], sizes = [8, 32], strides = [1, 1]} : vector<8x128xf32> to vector<8x32xf32>
    %cst_35 = arith.constant 5.000000e-01 : f32
    %68 = vector.broadcast %cst_35 : f32 to vector<8x32xf32>
    %69 = arith.mulf %68, %67 : vector<8x32xf32>
    %70 = math.tanh %69 : vector<8x32xf32>
    %cst_36 = arith.constant 1.000000e+00 : f32
    %71 = vector.broadcast %cst_36 : f32 to vector<8x32xf32>
    %72 = arith.addf %70, %71 : vector<8x32xf32>
    %cst_37 = arith.constant 5.000000e-01 : f32
    %73 = vector.broadcast %cst_37 : f32 to vector<8x32xf32>
    %74 = arith.mulf %73, %72 : vector<8x32xf32>
    %75 = vector.extract_strided_slice %58 {offsets = [0, 64], sizes = [8, 32], strides = [1, 1]} : vector<8x128xf32> to vector<8x32xf32>
    %76 = math.tanh %75 : vector<8x32xf32>
    %77 = vector.extract_strided_slice %58 {offsets = [0, 96], sizes = [8, 32], strides = [1, 1]} : vector<8x128xf32> to vector<8x32xf32>
    %cst_38 = arith.constant 5.000000e-01 : f32
    %78 = vector.broadcast %cst_38 : f32 to vector<8x32xf32>
    %79 = arith.mulf %78, %77 : vector<8x32xf32>
    %80 = math.tanh %79 : vector<8x32xf32>
    %cst_39 = arith.constant 1.000000e+00 : f32
    %81 = vector.broadcast %cst_39 : f32 to vector<8x32xf32>
    %82 = arith.addf %80, %81 : vector<8x32xf32>
    %cst_40 = arith.constant 5.000000e-01 : f32
    %83 = vector.broadcast %cst_40 : f32 to vector<8x32xf32>
    %84 = arith.mulf %83, %82 : vector<8x32xf32>
    %85 = arith.mulf %74, %50 : vector<8x32xf32>
    %86 = arith.mulf %66, %76 : vector<8x32xf32>
    %87 = arith.addf %85, %86 : vector<8x32xf32>
    %88 = math.tanh %87 : vector<8x32xf32>
    %89 = arith.mulf %84, %88 : vector<8x32xf32>
    %c2 = arith.constant 2 : index
    %c0_41 = arith.constant 0 : index
    %c0_42 = arith.constant 0 : index
    %90 = vector.load %arg12[%c2, %c0_41, %c0_42] : memref<8x8x128xbf16, #tpu.memory_space<vmem>>, vector<1x8x128xbf16>
    %91 = vector.shape_cast %90 : vector<1x8x128xbf16> to vector<8x128xbf16>
    %92 = arith.extf %91 : vector<8x128xbf16> to vector<8x128xf32>
    %93 = arith.truncf %89 : vector<8x32xf32> to vector<8x32xbf16>
    %cst_43 = arith.constant dense<0.000000e+00> : vector<8x128xf32>
    %94 = tpu.matmul %93, %13, %cst_43 {dimension_numbers = #tpu.dot_dimension_numbers<[1], [0], [0], [1], [0, 0, 1, 1], [], []>} : vector<8x32xbf16>, vector<32x128xbf16>, vector<8x128xf32> -> vector<8x128xf32>
    %95 = arith.addf %92, %94 : vector<8x128xf32>
    %96 = vector.extract_strided_slice %95 {offsets = [0, 0], sizes = [8, 32], strides = [1, 1]} : vector<8x128xf32> to vector<8x32xf32>
    %cst_44 = arith.constant 5.000000e-01 : f32
    %97 = vector.broadcast %cst_44 : f32 to vector<8x32xf32>
    %98 = arith.mulf %97, %96 : vector<8x32xf32>
    %99 = math.tanh %98 : vector<8x32xf32>
    %cst_45 = arith.constant 1.000000e+00 : f32
    %100 = vector.broadcast %cst_45 : f32 to vector<8x32xf32>
    %101 = arith.addf %99, %100 : vector<8x32xf32>
    %cst_46 = arith.constant 5.000000e-01 : f32
    %102 = vector.broadcast %cst_46 : f32 to vector<8x32xf32>
    %103 = arith.mulf %102, %101 : vector<8x32xf32>
    %104 = vector.extract_strided_slice %95 {offsets = [0, 32], sizes = [8, 32], strides = [1, 1]} : vector<8x128xf32> to vector<8x32xf32>
    %cst_47 = arith.constant 5.000000e-01 : f32
    %105 = vector.broadcast %cst_47 : f32 to vector<8x32xf32>
    %106 = arith.mulf %105, %104 : vector<8x32xf32>
    %107 = math.tanh %106 : vector<8x32xf32>
    %cst_48 = arith.constant 1.000000e+00 : f32
    %108 = vector.broadcast %cst_48 : f32 to vector<8x32xf32>
    %109 = arith.addf %107, %108 : vector<8x32xf32>
    %cst_49 = arith.constant 5.000000e-01 : f32
    %110 = vector.broadcast %cst_49 : f32 to vector<8x32xf32>
    %111 = arith.mulf %110, %109 : vector<8x32xf32>
    %112 = vector.extract_strided_slice %95 {offsets = [0, 64], sizes = [8, 32], strides = [1, 1]} : vector<8x128xf32> to vector<8x32xf32>
    %113 = math.tanh %112 : vector<8x32xf32>
    %114 = vector.extract_strided_slice %95 {offsets = [0, 96], sizes = [8, 32], strides = [1, 1]} : vector<8x128xf32> to vector<8x32xf32>
    %cst_50 = arith.constant 5.000000e-01 : f32
    %115 = vector.broadcast %cst_50 : f32 to vector<8x32xf32>
    %116 = arith.mulf %115, %114 : vector<8x32xf32>
    %117 = math.tanh %116 : vector<8x32xf32>
    %cst_51 = arith.constant 1.000000e+00 : f32
    %118 = vector.broadcast %cst_51 : f32 to vector<8x32xf32>
    %119 = arith.addf %117, %118 : vector<8x32xf32>
    %cst_52 = arith.constant 5.000000e-01 : f32
    %120 = vector.broadcast %cst_52 : f32 to vector<8x32xf32>
    %121 = arith.mulf %120, %119 : vector<8x32xf32>
    %122 = arith.mulf %111, %87 : vector<8x32xf32>
    %123 = arith.mulf %103, %113 : vector<8x32xf32>
    %124 = arith.addf %122, %123 : vector<8x32xf32>
    %125 = math.tanh %124 : vector<8x32xf32>
    %126 = arith.mulf %121, %125 : vector<8x32xf32>
    %c3 = arith.constant 3 : index
    %c0_53 = arith.constant 0 : index
    %c0_54 = arith.constant 0 : index
    %127 = vector.load %arg12[%c3, %c0_53, %c0_54] : memref<8x8x128xbf16, #tpu.memory_space<vmem>>, vector<1x8x128xbf16>
    %128 = vector.shape_cast %127 : vector<1x8x128xbf16> to vector<8x128xbf16>
    %129 = arith.extf %128 : vector<8x128xbf16> to vector<8x128xf32>
    %130 = arith.truncf %126 : vector<8x32xf32> to vector<8x32xbf16>
    %cst_55 = arith.constant dense<0.000000e+00> : vector<8x128xf32>
    %131 = tpu.matmul %130, %13, %cst_55 {dimension_numbers = #tpu.dot_dimension_numbers<[1], [0], [0], [1], [0, 0, 1, 1], [], []>} : vector<8x32xbf16>, vector<32x128xbf16>, vector<8x128xf32> -> vector<8x128xf32>
    %132 = arith.addf %129, %131 : vector<8x128xf32>
    %133 = vector.extract_strided_slice %132 {offsets = [0, 0], sizes = [8, 32], strides = [1, 1]} : vector<8x128xf32> to vector<8x32xf32>
    %cst_56 = arith.constant 5.000000e-01 : f32
    %134 = vector.broadcast %cst_56 : f32 to vector<8x32xf32>
    %135 = arith.mulf %134, %133 : vector<8x32xf32>
    %136 = math.tanh %135 : vector<8x32xf32>
    %cst_57 = arith.constant 1.000000e+00 : f32
    %137 = vector.broadcast %cst_57 : f32 to vector<8x32xf32>
    %138 = arith.addf %136, %137 : vector<8x32xf32>
    %cst_58 = arith.constant 5.000000e-01 : f32
    %139 = vector.broadcast %cst_58 : f32 to vector<8x32xf32>
    %140 = arith.mulf %139, %138 : vector<8x32xf32>
    %141 = vector.extract_strided_slice %132 {offsets = [0, 32], sizes = [8, 32], strides = [1, 1]} : vector<8x128xf32> to vector<8x32xf32>
    %cst_59 = arith.constant 5.000000e-01 : f32
    %142 = vector.broadcast %cst_59 : f32 to vector<8x32xf32>
    %143 = arith.mulf %142, %141 : vector<8x32xf32>
    %144 = math.tanh %143 : vector<8x32xf32>
    %cst_60 = arith.constant 1.000000e+00 : f32
    %145 = vector.broadcast %cst_60 : f32 to vector<8x32xf32>
    %146 = arith.addf %144, %145 : vector<8x32xf32>
    %cst_61 = arith.constant 5.000000e-01 : f32
    %147 = vector.broadcast %cst_61 : f32 to vector<8x32xf32>
    %148 = arith.mulf %147, %146 : vector<8x32xf32>
    %149 = vector.extract_strided_slice %132 {offsets = [0, 64], sizes = [8, 32], strides = [1, 1]} : vector<8x128xf32> to vector<8x32xf32>
    %150 = math.tanh %149 : vector<8x32xf32>
    %151 = vector.extract_strided_slice %132 {offsets = [0, 96], sizes = [8, 32], strides = [1, 1]} : vector<8x128xf32> to vector<8x32xf32>
    %cst_62 = arith.constant 5.000000e-01 : f32
    %152 = vector.broadcast %cst_62 : f32 to vector<8x32xf32>
    %153 = arith.mulf %152, %151 : vector<8x32xf32>
    %154 = math.tanh %153 : vector<8x32xf32>
    %cst_63 = arith.constant 1.000000e+00 : f32
    %155 = vector.broadcast %cst_63 : f32 to vector<8x32xf32>
    %156 = arith.addf %154, %155 : vector<8x32xf32>
    %cst_64 = arith.constant 5.000000e-01 : f32
    %157 = vector.broadcast %cst_64 : f32 to vector<8x32xf32>
    %158 = arith.mulf %157, %156 : vector<8x32xf32>
    %159 = arith.mulf %148, %124 : vector<8x32xf32>
    %160 = arith.mulf %140, %150 : vector<8x32xf32>
    %161 = arith.addf %159, %160 : vector<8x32xf32>
    %162 = math.tanh %161 : vector<8x32xf32>
    %163 = arith.mulf %158, %162 : vector<8x32xf32>
    %c4 = arith.constant 4 : index
    %c0_65 = arith.constant 0 : index
    %c0_66 = arith.constant 0 : index
    %164 = vector.load %arg12[%c4, %c0_65, %c0_66] : memref<8x8x128xbf16, #tpu.memory_space<vmem>>, vector<1x8x128xbf16>
    %165 = vector.shape_cast %164 : vector<1x8x128xbf16> to vector<8x128xbf16>
    %166 = arith.extf %165 : vector<8x128xbf16> to vector<8x128xf32>
    %167 = arith.truncf %163 : vector<8x32xf32> to vector<8x32xbf16>
    %cst_67 = arith.constant dense<0.000000e+00> : vector<8x128xf32>
    %168 = tpu.matmul %167, %13, %cst_67 {dimension_numbers = #tpu.dot_dimension_numbers<[1], [0], [0], [1], [0, 0, 1, 1], [], []>} : vector<8x32xbf16>, vector<32x128xbf16>, vector<8x128xf32> -> vector<8x128xf32>
    %169 = arith.addf %166, %168 : vector<8x128xf32>
    %170 = vector.extract_strided_slice %169 {offsets = [0, 0], sizes = [8, 32], strides = [1, 1]} : vector<8x128xf32> to vector<8x32xf32>
    %cst_68 = arith.constant 5.000000e-01 : f32
    %171 = vector.broadcast %cst_68 : f32 to vector<8x32xf32>
    %172 = arith.mulf %171, %170 : vector<8x32xf32>
    %173 = math.tanh %172 : vector<8x32xf32>
    %cst_69 = arith.constant 1.000000e+00 : f32
    %174 = vector.broadcast %cst_69 : f32 to vector<8x32xf32>
    %175 = arith.addf %173, %174 : vector<8x32xf32>
    %cst_70 = arith.constant 5.000000e-01 : f32
    %176 = vector.broadcast %cst_70 : f32 to vector<8x32xf32>
    %177 = arith.mulf %176, %175 : vector<8x32xf32>
    %178 = vector.extract_strided_slice %169 {offsets = [0, 32], sizes = [8, 32], strides = [1, 1]} : vector<8x128xf32> to vector<8x32xf32>
    %cst_71 = arith.constant 5.000000e-01 : f32
    %179 = vector.broadcast %cst_71 : f32 to vector<8x32xf32>
    %180 = arith.mulf %179, %178 : vector<8x32xf32>
    %181 = math.tanh %180 : vector<8x32xf32>
    %cst_72 = arith.constant 1.000000e+00 : f32
    %182 = vector.broadcast %cst_72 : f32 to vector<8x32xf32>
    %183 = arith.addf %181, %182 : vector<8x32xf32>
    %cst_73 = arith.constant 5.000000e-01 : f32
    %184 = vector.broadcast %cst_73 : f32 to vector<8x32xf32>
    %185 = arith.mulf %184, %183 : vector<8x32xf32>
    %186 = vector.extract_strided_slice %169 {offsets = [0, 64], sizes = [8, 32], strides = [1, 1]} : vector<8x128xf32> to vector<8x32xf32>
    %187 = math.tanh %186 : vector<8x32xf32>
    %188 = vector.extract_strided_slice %169 {offsets = [0, 96], sizes = [8, 32], strides = [1, 1]} : vector<8x128xf32> to vector<8x32xf32>
    %cst_74 = arith.constant 5.000000e-01 : f32
    %189 = vector.broadcast %cst_74 : f32 to vector<8x32xf32>
    %190 = arith.mulf %189, %188 : vector<8x32xf32>
    %191 = math.tanh %190 : vector<8x32xf32>
    %cst_75 = arith.constant 1.000000e+00 : f32
    %192 = vector.broadcast %cst_75 : f32 to vector<8x32xf32>
    %193 = arith.addf %191, %192 : vector<8x32xf32>
    %cst_76 = arith.constant 5.000000e-01 : f32
    %194 = vector.broadcast %cst_76 : f32 to vector<8x32xf32>
    %195 = arith.mulf %194, %193 : vector<8x32xf32>
    %196 = arith.mulf %185, %161 : vector<8x32xf32>
    %197 = arith.mulf %177, %187 : vector<8x32xf32>
    %198 = arith.addf %196, %197 : vector<8x32xf32>
    %199 = math.tanh %198 : vector<8x32xf32>
    %200 = arith.mulf %195, %199 : vector<8x32xf32>
    %c5 = arith.constant 5 : index
    %c0_77 = arith.constant 0 : index
    %c0_78 = arith.constant 0 : index
    %201 = vector.load %arg12[%c5, %c0_77, %c0_78] : memref<8x8x128xbf16, #tpu.memory_space<vmem>>, vector<1x8x128xbf16>
    %202 = vector.shape_cast %201 : vector<1x8x128xbf16> to vector<8x128xbf16>
    %203 = arith.extf %202 : vector<8x128xbf16> to vector<8x128xf32>
    %204 = arith.truncf %200 : vector<8x32xf32> to vector<8x32xbf16>
    %cst_79 = arith.constant dense<0.000000e+00> : vector<8x128xf32>
    %205 = tpu.matmul %204, %13, %cst_79 {dimension_numbers = #tpu.dot_dimension_numbers<[1], [0], [0], [1], [0, 0, 1, 1], [], []>} : vector<8x32xbf16>, vector<32x128xbf16>, vector<8x128xf32> -> vector<8x128xf32>
    %206 = arith.addf %203, %205 : vector<8x128xf32>
    %207 = vector.extract_strided_slice %206 {offsets = [0, 0], sizes = [8, 32], strides = [1, 1]} : vector<8x128xf32> to vector<8x32xf32>
    %cst_80 = arith.constant 5.000000e-01 : f32
    %208 = vector.broadcast %cst_80 : f32 to vector<8x32xf32>
    %209 = arith.mulf %208, %207 : vector<8x32xf32>
    %210 = math.tanh %209 : vector<8x32xf32>
    %cst_81 = arith.constant 1.000000e+00 : f32
    %211 = vector.broadcast %cst_81 : f32 to vector<8x32xf32>
    %212 = arith.addf %210, %211 : vector<8x32xf32>
    %cst_82 = arith.constant 5.000000e-01 : f32
    %213 = vector.broadcast %cst_82 : f32 to vector<8x32xf32>
    %214 = arith.mulf %213, %212 : vector<8x32xf32>
    %215 = vector.extract_strided_slice %206 {offsets = [0, 32], sizes = [8, 32], strides = [1, 1]} : vector<8x128xf32> to vector<8x32xf32>
    %cst_83 = arith.constant 5.000000e-01 : f32
    %216 = vector.broadcast %cst_83 : f32 to vector<8x32xf32>
    %217 = arith.mulf %216, %215 : vector<8x32xf32>
    %218 = math.tanh %217 : vector<8x32xf32>
    %cst_84 = arith.constant 1.000000e+00 : f32
    %219 = vector.broadcast %cst_84 : f32 to vector<8x32xf32>
    %220 = arith.addf %218, %219 : vector<8x32xf32>
    %cst_85 = arith.constant 5.000000e-01 : f32
    %221 = vector.broadcast %cst_85 : f32 to vector<8x32xf32>
    %222 = arith.mulf %221, %220 : vector<8x32xf32>
    %223 = vector.extract_strided_slice %206 {offsets = [0, 64], sizes = [8, 32], strides = [1, 1]} : vector<8x128xf32> to vector<8x32xf32>
    %224 = math.tanh %223 : vector<8x32xf32>
    %225 = vector.extract_strided_slice %206 {offsets = [0, 96], sizes = [8, 32], strides = [1, 1]} : vector<8x128xf32> to vector<8x32xf32>
    %cst_86 = arith.constant 5.000000e-01 : f32
    %226 = vector.broadcast %cst_86 : f32 to vector<8x32xf32>
    %227 = arith.mulf %226, %225 : vector<8x32xf32>
    %228 = math.tanh %227 : vector<8x32xf32>
    %cst_87 = arith.constant 1.000000e+00 : f32
    %229 = vector.broadcast %cst_87 : f32 to vector<8x32xf32>
    %230 = arith.addf %228, %229 : vector<8x32xf32>
    %cst_88 = arith.constant 5.000000e-01 : f32
    %231 = vector.broadcast %cst_88 : f32 to vector<8x32xf32>
    %232 = arith.mulf %231, %230 : vector<8x32xf32>
    %233 = arith.mulf %222, %198 : vector<8x32xf32>
    %234 = arith.mulf %214, %224 : vector<8x32xf32>
    %235 = arith.addf %233, %234 : vector<8x32xf32>
    %236 = math.tanh %235 : vector<8x32xf32>
    %237 = arith.mulf %232, %236 : vector<8x32xf32>
    %c6 = arith.constant 6 : index
    %c0_89 = arith.constant 0 : index
    %c0_90 = arith.constant 0 : index
    %238 = vector.load %arg12[%c6, %c0_89, %c0_90] : memref<8x8x128xbf16, #tpu.memory_space<vmem>>, vector<1x8x128xbf16>
    %239 = vector.shape_cast %238 : vector<1x8x128xbf16> to vector<8x128xbf16>
    %240 = arith.extf %239 : vector<8x128xbf16> to vector<8x128xf32>
    %241 = arith.truncf %237 : vector<8x32xf32> to vector<8x32xbf16>
    %cst_91 = arith.constant dense<0.000000e+00> : vector<8x128xf32>
    %242 = tpu.matmul %241, %13, %cst_91 {dimension_numbers = #tpu.dot_dimension_numbers<[1], [0], [0], [1], [0, 0, 1, 1], [], []>} : vector<8x32xbf16>, vector<32x128xbf16>, vector<8x128xf32> -> vector<8x128xf32>
    %243 = arith.addf %240, %242 : vector<8x128xf32>
    %244 = vector.extract_strided_slice %243 {offsets = [0, 0], sizes = [8, 32], strides = [1, 1]} : vector<8x128xf32> to vector<8x32xf32>
    %cst_92 = arith.constant 5.000000e-01 : f32
    %245 = vector.broadcast %cst_92 : f32 to vector<8x32xf32>
    %246 = arith.mulf %245, %244 : vector<8x32xf32>
    %247 = math.tanh %246 : vector<8x32xf32>
    %cst_93 = arith.constant 1.000000e+00 : f32
    %248 = vector.broadcast %cst_93 : f32 to vector<8x32xf32>
    %249 = arith.addf %247, %248 : vector<8x32xf32>
    %cst_94 = arith.constant 5.000000e-01 : f32
    %250 = vector.broadcast %cst_94 : f32 to vector<8x32xf32>
    %251 = arith.mulf %250, %249 : vector<8x32xf32>
    %252 = vector.extract_strided_slice %243 {offsets = [0, 32], sizes = [8, 32], strides = [1, 1]} : vector<8x128xf32> to vector<8x32xf32>
    %cst_95 = arith.constant 5.000000e-01 : f32
    %253 = vector.broadcast %cst_95 : f32 to vector<8x32xf32>
    %254 = arith.mulf %253, %252 : vector<8x32xf32>
    %255 = math.tanh %254 : vector<8x32xf32>
    %cst_96 = arith.constant 1.000000e+00 : f32
    %256 = vector.broadcast %cst_96 : f32 to vector<8x32xf32>
    %257 = arith.addf %255, %256 : vector<8x32xf32>
    %cst_97 = arith.constant 5.000000e-01 : f32
    %258 = vector.broadcast %cst_97 : f32 to vector<8x32xf32>
    %259 = arith.mulf %258, %257 : vector<8x32xf32>
    %260 = vector.extract_strided_slice %243 {offsets = [0, 64], sizes = [8, 32], strides = [1, 1]} : vector<8x128xf32> to vector<8x32xf32>
    %261 = math.tanh %260 : vector<8x32xf32>
    %262 = vector.extract_strided_slice %243 {offsets = [0, 96], sizes = [8, 32], strides = [1, 1]} : vector<8x128xf32> to vector<8x32xf32>
    %cst_98 = arith.constant 5.000000e-01 : f32
    %263 = vector.broadcast %cst_98 : f32 to vector<8x32xf32>
    %264 = arith.mulf %263, %262 : vector<8x32xf32>
    %265 = math.tanh %264 : vector<8x32xf32>
    %cst_99 = arith.constant 1.000000e+00 : f32
    %266 = vector.broadcast %cst_99 : f32 to vector<8x32xf32>
    %267 = arith.addf %265, %266 : vector<8x32xf32>
    %cst_100 = arith.constant 5.000000e-01 : f32
    %268 = vector.broadcast %cst_100 : f32 to vector<8x32xf32>
    %269 = arith.mulf %268, %267 : vector<8x32xf32>
    %270 = arith.mulf %259, %235 : vector<8x32xf32>
    %271 = arith.mulf %251, %261 : vector<8x32xf32>
    %272 = arith.addf %270, %271 : vector<8x32xf32>
    %273 = math.tanh %272 : vector<8x32xf32>
    %274 = arith.mulf %269, %273 : vector<8x32xf32>
    %c7 = arith.constant 7 : index
    %c0_101 = arith.constant 0 : index
    %c0_102 = arith.constant 0 : index
    %275 = vector.load %arg12[%c7, %c0_101, %c0_102] : memref<8x8x128xbf16, #tpu.memory_space<vmem>>, vector<1x8x128xbf16>
    %276 = vector.shape_cast %275 : vector<1x8x128xbf16> to vector<8x128xbf16>
    %277 = arith.extf %276 : vector<8x128xbf16> to vector<8x128xf32>
    %278 = arith.truncf %274 : vector<8x32xf32> to vector<8x32xbf16>
    %cst_103 = arith.constant dense<0.000000e+00> : vector<8x128xf32>
    %279 = tpu.matmul %278, %13, %cst_103 {dimension_numbers = #tpu.dot_dimension_numbers<[1], [0], [0], [1], [0, 0, 1, 1], [], []>} : vector<8x32xbf16>, vector<32x128xbf16>, vector<8x128xf32> -> vector<8x128xf32>
    %280 = arith.addf %277, %279 : vector<8x128xf32>
    %281 = vector.extract_strided_slice %280 {offsets = [0, 0], sizes = [8, 32], strides = [1, 1]} : vector<8x128xf32> to vector<8x32xf32>
    %cst_104 = arith.constant 5.000000e-01 : f32
    %282 = vector.broadcast %cst_104 : f32 to vector<8x32xf32>
    %283 = arith.mulf %282, %281 : vector<8x32xf32>
    %284 = math.tanh %283 : vector<8x32xf32>
    %cst_105 = arith.constant 1.000000e+00 : f32
    %285 = vector.broadcast %cst_105 : f32 to vector<8x32xf32>
    %286 = arith.addf %284, %285 : vector<8x32xf32>
    %cst_106 = arith.constant 5.000000e-01 : f32
    %287 = vector.broadcast %cst_106 : f32 to vector<8x32xf32>
    %288 = arith.mulf %287, %286 : vector<8x32xf32>
    %289 = vector.extract_strided_slice %280 {offsets = [0, 32], sizes = [8, 32], strides = [1, 1]} : vector<8x128xf32> to vector<8x32xf32>
    %cst_107 = arith.constant 5.000000e-01 : f32
    %290 = vector.broadcast %cst_107 : f32 to vector<8x32xf32>
    %291 = arith.mulf %290, %289 : vector<8x32xf32>
    %292 = math.tanh %291 : vector<8x32xf32>
    %cst_108 = arith.constant 1.000000e+00 : f32
    %293 = vector.broadcast %cst_108 : f32 to vector<8x32xf32>
    %294 = arith.addf %292, %293 : vector<8x32xf32>
    %cst_109 = arith.constant 5.000000e-01 : f32
    %295 = vector.broadcast %cst_109 : f32 to vector<8x32xf32>
    %296 = arith.mulf %295, %294 : vector<8x32xf32>
    %297 = vector.extract_strided_slice %280 {offsets = [0, 64], sizes = [8, 32], strides = [1, 1]} : vector<8x128xf32> to vector<8x32xf32>
    %298 = math.tanh %297 : vector<8x32xf32>
    %299 = vector.extract_strided_slice %280 {offsets = [0, 96], sizes = [8, 32], strides = [1, 1]} : vector<8x128xf32> to vector<8x32xf32>
    %cst_110 = arith.constant 5.000000e-01 : f32
    %300 = vector.broadcast %cst_110 : f32 to vector<8x32xf32>
    %301 = arith.mulf %300, %299 : vector<8x32xf32>
    %302 = math.tanh %301 : vector<8x32xf32>
    %cst_111 = arith.constant 1.000000e+00 : f32
    %303 = vector.broadcast %cst_111 : f32 to vector<8x32xf32>
    %304 = arith.addf %302, %303 : vector<8x32xf32>
    %cst_112 = arith.constant 5.000000e-01 : f32
    %305 = vector.broadcast %cst_112 : f32 to vector<8x32xf32>
    %306 = arith.mulf %305, %304 : vector<8x32xf32>
    %307 = arith.mulf %296, %272 : vector<8x32xf32>
    %308 = arith.mulf %288, %298 : vector<8x32xf32>
    %309 = arith.addf %307, %308 : vector<8x32xf32>
    %310 = math.tanh %309 : vector<8x32xf32>
    %311 = arith.mulf %306, %310 : vector<8x32xf32>
    %c0_113 = arith.constant 0 : index
    %c0_114 = arith.constant 0 : index
    %312 = vector.load %arg13[%c0_113, %c0_114] : memref<8x32xf32, #tpu.memory_space<vmem>>, vector<8x32xf32>
    tpu.vector_store %arg13[%c0_113, %c0_114], %311 {strides = array<i32>} : memref<8x32xf32, #tpu.memory_space<vmem>>, vector<8x32xf32>,
    %c0_115 = arith.constant 0 : index
    %c0_116 = arith.constant 0 : index
    %313 = vector.load %arg14[%c0_115, %c0_116] : memref<8x32xf32, #tpu.memory_space<vmem>>, vector<8x32xf32>
    tpu.vector_store %arg14[%c0_115, %c0_116], %309 {strides = array<i32>} : memref<8x32xf32, #tpu.memory_space<vmem>>, vector<8x32xf32>,
    %c0_i32_117 = arith.constant 0 : i32
    %314 = arith.cmpi eq, %arg1, %c0_i32_117 : i32
    %315 = arith.extui %314 : i1 to i32
    %c0_i32_118 = arith.constant 0 : i32
    %316 = arith.cmpi ne, %315, %c0_i32_118 : i32
    scf.if %316 {
      %c7_119 = arith.constant 7 : index
      %c0_120 = arith.constant 0 : index
      %c0_121 = arith.constant 0 : index
      %317 = vector.load %arg2[%c7_119, %c0_120, %c0_121] : memref<8x8x32xbf16, #tpu.memory_space<vmem>>, vector<1x8x32xbf16>
      %318 = vector.shape_cast %317 : vector<1x8x32xbf16> to vector<8x32xbf16>
      %c0_122 = arith.constant 0 : index
      %c0_123 = arith.constant 0 : index
      %319 = vector.load %arg6[%c0_122, %c0_123] : memref<32x96xbf16, #tpu.memory_space<vmem>>, vector<32x96xbf16>
      %cst_124 = arith.constant dense<0.000000e+00> : vector<8x96xf32>
      %320 = tpu.matmul %318, %319, %cst_124 {dimension_numbers = #tpu.dot_dimension_numbers<[1], [0], [0], [1], [0, 0, 1, 1], [], []>} : vector<8x32xbf16>, vector<32x96xbf16>, vector<8x96xf32> -> vector<8x96xf32>
      %c0_125 = arith.constant 0 : index
      %c0_126 = arith.constant 0 : index
      %321 = vector.load %arg7[%c0_125, %c0_126] : memref<1x96xf32, #tpu.memory_space<vmem>>, vector<1x96xf32>
      %322 = vector.broadcast %321 : vector<1x96xf32> to vector<8x96xf32>
      %323 = arith.addf %320, %322 : vector<8x96xf32>
      %324 = vector.extract_strided_slice %323 {offsets = [0, 0], sizes = [8, 32], strides = [1, 1]} : vector<8x96xf32> to vector<8x32xf32>
      %cst_127 = arith.constant 5.000000e-01 : f32
      %325 = vector.broadcast %cst_127 : f32 to vector<8x32xf32>
      %326 = arith.mulf %325, %324 : vector<8x32xf32>
      %327 = math.tanh %326 : vector<8x32xf32>
      %cst_128 = arith.constant 1.000000e+00 : f32
      %328 = vector.broadcast %cst_128 : f32 to vector<8x32xf32>
      %329 = arith.addf %327, %328 : vector<8x32xf32>
      %cst_129 = arith.constant 5.000000e-01 : f32
      %330 = vector.broadcast %cst_129 : f32 to vector<8x32xf32>
      %331 = arith.mulf %330, %329 : vector<8x32xf32>
      %332 = vector.extract_strided_slice %323 {offsets = [0, 32], sizes = [8, 32], strides = [1, 1]} : vector<8x96xf32> to vector<8x32xf32>
      %333 = math.tanh %332 : vector<8x32xf32>
      %334 = vector.extract_strided_slice %323 {offsets = [0, 64], sizes = [8, 32], strides = [1, 1]} : vector<8x96xf32> to vector<8x32xf32>
      %cst_130 = arith.constant 5.000000e-01 : f32
      %335 = vector.broadcast %cst_130 : f32 to vector<8x32xf32>
      %336 = arith.mulf %335, %334 : vector<8x32xf32>
      %337 = math.tanh %336 : vector<8x32xf32>
      %cst_131 = arith.constant 1.000000e+00 : f32
      %338 = vector.broadcast %cst_131 : f32 to vector<8x32xf32>
      %339 = arith.addf %337, %338 : vector<8x32xf32>
      %cst_132 = arith.constant 5.000000e-01 : f32
      %340 = vector.broadcast %cst_132 : f32 to vector<8x32xf32>
      %341 = arith.mulf %340, %339 : vector<8x32xf32>
      %342 = arith.mulf %331, %333 : vector<8x32xf32>
      %343 = math.tanh %342 : vector<8x32xf32>
      %344 = arith.mulf %341, %343 : vector<8x32xf32>
      %c0_133 = arith.constant 0 : index
      %c0_134 = arith.constant 0 : index
      %345 = vector.load %arg8[%c0_133, %c0_134] : memref<32x1xf32, #tpu.memory_space<vmem>>, vector<32x1xf32>
      %cst_135 = arith.constant dense<0.000000e+00> : vector<8x1xf32>
      %346 = tpu.matmul %311, %345, %cst_135 {dimension_numbers = #tpu.dot_dimension_numbers<[1], [0], [0], [1], [0, 0, 1, 1], [], []>} : vector<8x32xf32>, vector<32x1xf32>, vector<8x1xf32> -> vector<8x1xf32>
      %c0_136 = arith.constant 0 : index
      %c0_137 = arith.constant 0 : index
      %347 = vector.load %arg9[%c0_136, %c0_137] : memref<32x1xf32, #tpu.memory_space<vmem>>, vector<32x1xf32>
      %cst_138 = arith.constant dense<0.000000e+00> : vector<8x1xf32>
      %348 = tpu.matmul %344, %347, %cst_138 {dimension_numbers = #tpu.dot_dimension_numbers<[1], [0], [0], [1], [0, 0, 1, 1], [], []>} : vector<8x32xf32>, vector<32x1xf32>, vector<8x1xf32> -> vector<8x1xf32>
      %349 = arith.addf %346, %348 : vector<8x1xf32>
      %c0_139 = arith.constant 0 : index
      %c0_140 = arith.constant 0 : index
      %350 = vector.load %arg10[%c0_139, %c0_140] : memref<1x1xf32, #tpu.memory_space<vmem>>, vector<1x1xf32>
      %351 = vector.broadcast %350 : vector<1x1xf32> to vector<8x1xf32>
      %352 = arith.addf %349, %351 : vector<8x1xf32>
      %cst_141 = arith.constant 5.000000e-01 : f32
      %353 = vector.broadcast %cst_141 : f32 to vector<8x1xf32>
      %354 = arith.mulf %353, %352 : vector<8x1xf32>
      %355 = math.tanh %354 : vector<8x1xf32>
      %cst_142 = arith.constant 1.000000e+00 : f32
      %356 = vector.broadcast %cst_142 : f32 to vector<8x1xf32>
      %357 = arith.addf %355, %356 : vector<8x1xf32>
      %cst_143 = arith.constant 5.000000e-01 : f32
      %358 = vector.broadcast %cst_143 : f32 to vector<8x1xf32>
      %359 = arith.mulf %358, %357 : vector<8x1xf32>
      %c0_144 = arith.constant 0 : index
      %c0_145 = arith.constant 0 : index
      %360 = vector.load %arg11[%c0_144, %c0_145] : memref<8x1xf32, #tpu.memory_space<vmem>>, vector<8x1xf32>
      tpu.vector_store %arg11[%c0_144, %c0_145], %359 {strides = array<i32>} : memref<8x1xf32, #tpu.memory_space<vmem>>, vector<8x1xf32>,
    } else {
    }
    return
  }
  func.func @transform_0(%arg0: i32, %arg1: i32) -> (i32, i32, i32) {
    %c0_i32 = arith.constant 0 : i32
    %c0_i32_0 = arith.constant 0 : i32
    return %arg1, %arg0, %c0_i32 : i32, i32, i32
  }
  func.func @transform_1(%arg0: i32, %arg1: i32) -> (i32, i32) {
    %c0_i32 = arith.constant 0 : i32
    %c0_i32_0 = arith.constant 0 : i32
    %c0_i32_1 = arith.constant 0 : i32
    return %c0_i32, %c0_i32_0 : i32, i32
  }
  func.func @transform_2(%arg0: i32, %arg1: i32) -> (i32, i32) {
    %c0_i32 = arith.constant 0 : i32
    %c0_i32_0 = arith.constant 0 : i32
    %c0_i32_1 = arith.constant 0 : i32
    return %c0_i32, %c0_i32_0 : i32, i32
  }
  func.func @transform_3(%arg0: i32, %arg1: i32) -> (i32, i32) {
    %c0_i32 = arith.constant 0 : i32
    %c0_i32_0 = arith.constant 0 : i32
    %c0_i32_1 = arith.constant 0 : i32
    return %c0_i32, %c0_i32_0 : i32, i32
  }
  func.func @transform_4(%arg0: i32, %arg1: i32) -> (i32, i32) {
    %c0_i32 = arith.constant 0 : i32
    %c0_i32_0 = arith.constant 0 : i32
    %c0_i32_1 = arith.constant 0 : i32
    return %c0_i32, %c0_i32_0 : i32, i32
  }
  func.func @transform_5(%arg0: i32, %arg1: i32) -> (i32, i32) {
    %c0_i32 = arith.constant 0 : i32
    %c0_i32_0 = arith.constant 0 : i32
    %c0_i32_1 = arith.constant 0 : i32
    return %c0_i32, %c0_i32_0 : i32, i32
  }
  func.func @transform_6(%arg0: i32, %arg1: i32) -> (i32, i32) {
    %c0_i32 = arith.constant 0 : i32
    %c0_i32_0 = arith.constant 0 : i32
    %c0_i32_1 = arith.constant 0 : i32
    return %c0_i32, %c0_i32_0 : i32, i32
  }
  func.func @transform_7(%arg0: i32, %arg1: i32) -> (i32, i32) {
    %c0_i32 = arith.constant 0 : i32
    %c0_i32_0 = arith.constant 0 : i32
    %c0_i32_1 = arith.constant 0 : i32
    return %c0_i32, %c0_i32_0 : i32, i32
  }
  func.func @transform_8(%arg0: i32, %arg1: i32) -> (i32, i32) {
    %c0_i32 = arith.constant 0 : i32
    %c0_i32_0 = arith.constant 0 : i32
    %c0_i32_1 = arith.constant 0 : i32
    return %c0_i32, %c0_i32_0 : i32, i32
  }
  func.func @transform_9(%arg0: i32, %arg1: i32) -> (i32, i32) {
    %c0_i32 = arith.constant 0 : i32
    %c0_i32_0 = arith.constant 0 : i32
    return %arg0, %c0_i32 : i32, i32
  }
}

</mosaic_0001>

<llo_original>
// kernel: tpu_custom_call.1
$region0: #{tpu_custom_call.1}
  #allocation0 [shape = 'u32[]', space=smem, size = 0x4, offset = 0x4, fixed_abs, tag = 'smem constant byte address 0x4 - core index']
  #allocation1 [shape = 'u32[144,128]{1,0:T(1,128)}', space=vmem, size = 0x12000, scoped, tag = 'internal scratch']
  #allocation2 [shape = 'bf16[8,8,128]{2,1,0:T(8,128)(2,1)}', space=vmem, size = 0x4000, scoped, tag = 'scratch operand']
  #allocation3 [shape = 'f32[8,32]{1,0:T(8,128)}', space=vmem, size = 0x1000, scoped, tag = 'scratch operand']
  #allocation4 [shape = 'f32[8,32]{1,0:T(8,128)}', space=vmem, size = 0x1000, scoped, tag = 'scratch operand']
  #allocation5 [shape = 'f32[1,1]{1,0:T(1,128)S(1)}', space=vmem, size = 0x200, scoped, tag = 'scoped memory for tpu_custom_call.1']
  %s0 = inlined_call_operand.vmem [shape: bf16[8,8,32], index: 0, kind: input, shape index: {}]
  %s1 = inlined_call_operand.vmem [shape: bf16[32,128], index: 1, kind: input, shape index: {}]
  %s2 = inlined_call_operand.vmem [shape: bf16[32,128], index: 2, kind: input, shape index: {}]
  %s3 = inlined_call_operand.vmem [shape: f32[1,128], index: 3, kind: input, shape index: {}]
  %s4 = inlined_call_operand.hbm [shape: bf16[32,96], index: 4, kind: input, shape index: {}]
  %s5 = inlined_call_operand.vmem [shape: f32[1,96], index: 5, kind: input, shape index: {}]
  %s6 = inlined_call_operand.vmem [shape: f32[32,1], index: 6, kind: input, shape index: {}]
  %s7 = inlined_call_operand.vmem [shape: f32[32,1], index: 7, kind: input, shape index: {}]
  %s8 = inlined_call_operand.<no memory space> [shape: f32[1,1], index: 8, kind: input, shape index: {}]
  %s9 = inlined_call_operand.vmem [shape: f32[8,1], index: 9, kind: output, shape index: {}]
  %s10 = sld [smem:[#allocation0]]
  $region58: #{tpu_custom_call.1} parent=0
    _
  %s12 = ssub.s32 1, %s10
  %s13 = scalar_select 0, %s12, %s10
  %v14 = vstv %s8
  %15 = vst [vmem:[#allocation5] sm:$0x1] %v14
  $region1: #{tpu_custom_call.1} parent=0
    #allocation6 [shape = 'u8[8192]{0}', space=vmem, size = 0x2000, scoped, tag = 'input window, operand 4, single buffered']
    #allocation7 [shape = 's32[1]{0}', space=sflag, size = 0x4, scoped, tag = 'scoped memory for tpu_custom_call.1']
    %16 = vsyncpa [#allocation7], 0
    // Predicated region
    $region2: #{tpu_custom_call.1} parent=1 // pred_check
      _
    $region3: #{tpu_custom_call.1} parent=1 // pred_check_branch
      %18 = sbr.rel (0) target = $region5
    $region4: #{tpu_custom_call.1} parent=1 // pred_region
      _
    $region5: #{tpu_custom_call.1} parent=1 // pred_fallthru
      _
    // Predicated region
    $region6: #{tpu_custom_call.1} parent=1 // pred_check
      _
    $region7: #{tpu_custom_call.1} parent=1 // pred_check_branch
      %20 = sbr.rel (0) target = $region9
    $region8: #{tpu_custom_call.1} parent=1 // pred_region
      _
    $region9: #{tpu_custom_call.1} parent=1 // pred_fallthru
      _
    // Predicated region
    $region10: #{tpu_custom_call.1} parent=1 // pred_check
      _
    $region11: #{tpu_custom_call.1} parent=1 // pred_check_branch
      %22 = sbr.rel (0) target = $region13
    $region12: #{tpu_custom_call.1} parent=1 // pred_region
      _
    $region13: #{tpu_custom_call.1} parent=1 // pred_fallthru
      _
    // Predicated region
    $region14: #{tpu_custom_call.1} parent=1 // pred_check
      _
    $region15: #{tpu_custom_call.1} parent=1 // pred_check_branch
      %24 = sbr.rel (0) target = $region17
    $region16: #{tpu_custom_call.1} parent=1 // pred_region
      _
    $region17: #{tpu_custom_call.1} parent=1 // pred_fallthru
      _
    // Predicated region
    $region18: #{tpu_custom_call.1} parent=1 // pred_check
      _
    $region19: #{tpu_custom_call.1} parent=1 // pred_check_branch
      %26 = sbr.rel (0) target = $region21
    $region20: #{tpu_custom_call.1} parent=1 // pred_region
      %s28 = ssub.s32 256, 256
      %29 = vsyncadd [#allocation7], %s28
      %s30 = sshll.u32 [#allocation6], 4
      %s31 = int_to_ptr.vmem [resolvable:$true] %s30
      %36 = dma.hbm_to_vmem [thread:$0]  %s4, 256, %s31, [#allocation7], 64, 64, 4
    $region21: #{tpu_custom_call.1} parent=1 // pred_fallthru
      _
    // Predicated region
    $region22: #{tpu_custom_call.1} parent=1 // pred_check
      _
    $region23: #{tpu_custom_call.1} parent=1 // pred_check_branch
      %38 = sbr.rel (0) target = $region25
    $region24: #{tpu_custom_call.1} parent=1 // pred_region
      _
    $region25: #{tpu_custom_call.1} parent=1 // pred_fallthru
      _
    // Predicated region
    $region26: #{tpu_custom_call.1} parent=1 // pred_check
      _
    $region27: #{tpu_custom_call.1} parent=1 // pred_check_branch
      %40 = sbr.rel (0) target = $region29
    $region28: #{tpu_custom_call.1} parent=1 // pred_region
      _
    $region29: #{tpu_custom_call.1} parent=1 // pred_fallthru
      _
    // Predicated region
    $region30: #{tpu_custom_call.1} parent=1 // pred_check
      _
    $region31: #{tpu_custom_call.1} parent=1 // pred_check_branch
      %42 = sbr.rel (0) target = $region33
    $region32: #{tpu_custom_call.1} parent=1 // pred_region
      _
    $region33: #{tpu_custom_call.1} parent=1 // pred_fallthru
      _
    // Predicated region
    $region34: #{tpu_custom_call.1} parent=1 // pred_check
      _
    $region35: #{tpu_custom_call.1} parent=1 // pred_check_branch
      %44 = sbr.rel (0) target = $region37
    $region36: #{tpu_custom_call.1} parent=1 // pred_region
      _
    $region37: #{tpu_custom_call.1} parent=1 // pred_fallthru
      _
    // Predicated region
    $region38: #{tpu_custom_call.1} parent=1 // pred_check
      _
    $region39: #{tpu_custom_call.1} parent=1 // pred_check_branch
      %46 = sbr.rel (0) target = $region41
    $region40: #{tpu_custom_call.1} parent=1 // pred_region
      %47 = dma.done [#allocation7], 256
    $region41: #{tpu_custom_call.1} parent=1 // pred_fallthru
      _
    %p49 = scmp.eq.s32.totalorder 0, 0
    // Predicated region
    $region42: #{tpu_custom_call.1} parent=1 // pred_check
      %p50 = pneg %p49
    $region43: #{tpu_custom_call.1} parent=1 // pred_check_branch
      %52 = sbr.rel (%p50) target = $region45
    $region44: #{tpu_custom_call.1} parent=1 // pred_region
      %vm53 = vcmask 261120
      %54 = vst.msk [vmem:[#allocation3] sm:$0xff] %vm53, 0.0
      %55 = vst.msk [vmem:[#allocation4] sm:$0xff] %vm53, 0.0
    $region45: #{tpu_custom_call.1} parent=1 // pred_fallthru
      _
    %v56 = vld [vmem:[%s0] sm:$0xf]
    %v57 = vld [vmem:[%s0 + $0x4] sm:$0xf]
    %v58 = vld [vmem:[%s0 + $0x8] sm:$0xf]
    %v59 = vld [vmem:[%s0 + $0xc] sm:$0xf]
    %v60 = vld [vmem:[%s0 + $0x10] sm:$0xf]
    %v61 = vld [vmem:[%s0 + $0x14] sm:$0xf]
    %v62 = vld [vmem:[%s0 + $0x18] sm:$0xf]
    %v63 = vld [vmem:[%s0 + $0x1c] sm:$0xf]
    %v64 = vld [vmem:[%s1] sm:$0xf]
    %v65 = vld [vmem:[%s1 + $0x4] sm:$0xf]
    %v66 = vld [vmem:[%s1 + $0x8] sm:$0xf]
    %v67 = vld [vmem:[%s1 + $0xc] sm:$0xf]
    %v68 = vld [vmem:[%s3] sm:$0x1]
    %v70 = vlaneseq
    %v71 = vshrl.u32 %v70, 7
    %v72 = vsub.s32 0, %v71
    %v73 = vrot.slane %v68, %v72
    %v83 = vunpack.c.l.b16 %v56
    %v84 = vunpack.c.l.b16 %v57
    %v85 = vunpack.c.l.b16 %v58
    %v86 = vunpack.c.l.b16 %v59
    %v87 = vunpack.c.l.b16 %v60
    %v88 = vunpack.c.l.b16 %v61
    %v89 = vunpack.c.l.b16 %v62
    %v90 = vunpack.c.l.b16 %v63
    %v91 = vpack.c.b16 %v84, %v83
    %v92 = vpack.c.b16 %v86, %v85
    %v93 = vpack.c.b16 %v88, %v87
    %v94 = vpack.c.b16 %v90, %v89
    %v99 = vunpack.c.l.b16 %v64
    %v100 = vunpack.c.l.b16 %v65
    %v101 = vunpack.c.l.b16 %v66
    %v102 = vunpack.c.l.b16 %v67
    %v103 = vpack.c.b16 %v100, %v99
    %v104 = vpack.c.b16 %v102, %v101
    %vm107 = vcmask 261120
    %v109 = vsel %vm107, %v91, 0
    %v112 = vsel %vm107, %v92, 0
    %v115 = vsel %vm107, %v93, 0
    %v118 = vsel %vm107, %v94, 0
    %120 = vmatprep.subr.bf16.mxu0 0
    %121 = vmatpush1.bf16.msra.mxu0 0
    %122 = vmatprep.subr.bf16.mxu0 0
    %123 = vmatpush1.bf16.msra.mxu0 0
    %124 = vmatprep.subr.bf16.mxu0 0
    %125 = vmatpush1.bf16.msra.mxu0 0
    %126 = vmatprep.subr.bf16.mxu0 0
    %127 = vmatpush1.bf16.msra.mxu0 0
    %128 = vmatprep.subr.bf16.mxu0 0
    %129 = vmatpush1.bf16.msra.mxu0 0
    %130 = vmatprep.subr.bf16.mxu0 0
    %131 = vmatpush1.bf16.msra.mxu0 0
    %132 = vmatprep.subr.bf16.mxu0 0
    %133 = vmatpush1.bf16.msra.mxu0 %v104
    %134 = vmatprep.subr.bf16.mxu0 0
    %135 = vmatpush1.bf16.msra.mxu0 %v103
    %136 = vmatprep.subr.bf16.mxu0 0
    %137 = vmatpush2.bf16.msra.mxu0 0
    %138 = vmatprep.subr.bf16.mxu0 0
    %139 = vmatpush2.bf16.msra.mxu0 0
    %140 = vmatprep.subr.bf16.mxu0 0
    %141 = vmatpush2.bf16.msra.mxu0 0
    %142 = vmatprep.subr.bf16.mxu0 0
    %143 = vmatpush2.bf16.msra.mxu0 0
    %144 = vmatprep.subr.bf16.mxu0 0
    %145 = vmatpush2.bf16.msra.mxu0 0
    %146 = vmatprep.subr.bf16.mxu0 0
    %147 = vmatpush2.bf16.msra.mxu0 0
    %148 = vmatprep.subr.bf16.mxu0 0
    %149 = vmatpush2.bf16.msra.mxu0 0
    %150 = vmatprep.subr.bf16.mxu0 0
    %151 = vmatpush2.bf16.msra.mxu0 0
    %152 = vmatprep.mubr.bf16.mxu0 0
    %153 = vmatmul.mubr.bf16.gmra.mxu0 %v109
    %v154 = vpop.f32.mrf.mxu0
    %v155 = vadd.f32 %v73, %v154
    %v156 = vpop.f32.mrf.mxu0
    %v157 = vpop.f32.mrf.mxu0
    %v158 = vadd.f32 %v73, %v157
    %v159 = vpop.f32.mrf.mxu0
    %160 = vmatprep.mubr.bf16.mxu0 0
    %161 = vmatmul.mubr.bf16.gmra.mxu0 %v112
    %v162 = vpop.f32.mrf.mxu0
    %v163 = vadd.f32 %v73, %v162
    %v164 = vpop.f32.mrf.mxu0
    %v165 = vpop.f32.mrf.mxu0
    %v166 = vadd.f32 %v73, %v165
    %v167 = vpop.f32.mrf.mxu0
    %168 = vmatprep.mubr.bf16.mxu0 0
    %169 = vmatmul.mubr.bf16.gmra.mxu0 %v115
    %v170 = vpop.f32.mrf.mxu0
    %v171 = vadd.f32 %v73, %v170
    %v172 = vpop.f32.mrf.mxu0
    %v173 = vpop.f32.mrf.mxu0
    %v174 = vadd.f32 %v73, %v173
    %v175 = vpop.f32.mrf.mxu0
    %176 = vmatprep.mubr.bf16.mxu0 0
    %177 = vmatmul.mubr.bf16.gmra.mxu0 %v118
    %v178 = vpop.f32.mrf.mxu0
    %v179 = vadd.f32 %v73, %v178
    %v180 = vpop.f32.mrf.mxu0
    %v181 = vpop.f32.mrf.mxu0
    %v182 = vadd.f32 %v73, %v181
    %v183 = vpop.f32.mrf.mxu0
    %184 = vdwg.mxu0
    %v185 = vpack.c.bf16 %v158, %v155
    %v186 = vpack.c.bf16 %v166, %v163
    %v187 = vpack.c.bf16 %v174, %v171
    %v188 = vpack.c.bf16 %v182, %v179
    %v193 = vunpack.c.l.b16 %v185
    %v194 = vunpack.c.h.b16 %v185
    %v195 = vunpack.c.l.b16 %v186
    %v196 = vunpack.c.h.b16 %v186
    %v197 = vunpack.c.l.b16 %v187
    %v198 = vunpack.c.h.b16 %v187
    %v199 = vunpack.c.l.b16 %v188
    %v200 = vunpack.c.h.b16 %v188
    %v201 = vpack.c.b16 %v193, %v193
    %v202 = vpack.c.b16 %v194, %v194
    %v203 = vpack.c.b16 %v195, %v195
    %v204 = vpack.c.b16 %v196, %v196
    %v205 = vpack.c.b16 %v197, %v197
    %v206 = vpack.c.b16 %v198, %v198
    %v207 = vpack.c.b16 %v199, %v199
    %v208 = vpack.c.b16 %v200, %v200
    %217 = vst [vmem:[#allocation2] sm:$0xf] %v201
    %218 = vst [vmem:[#allocation2 + $0x4] sm:$0xf] %v202
    %219 = vst [vmem:[#allocation2 + $0x8] sm:$0xf] %v203
    %220 = vst [vmem:[#allocation2 + $0xc] sm:$0xf] %v204
    %221 = vst [vmem:[#allocation2 + $0x10] sm:$0xf] %v205
    %222 = vst [vmem:[#allocation2 + $0x14] sm:$0xf] %v206
    %223 = vst [vmem:[#allocation2 + $0x18] sm:$0xf] %v207
    %224 = vst [vmem:[#allocation2 + $0x1c] sm:$0xf] %v208
    %v225 = vld [vmem:[%s2] sm:$0xf]
    %v226 = vld [vmem:[%s2 + $0x4] sm:$0xf]
    %v227 = vld [vmem:[%s2 + $0x8] sm:$0xf]
    %v228 = vld [vmem:[%s2 + $0xc] sm:$0xf]
    %v229 = vld [vmem:[#allocation3] sm:$0xff]
    %v230 = vld [vmem:[#allocation4] sm:$0xff]
    %v231 = vld [vmem:[#allocation2] sm:$0xf]
    %v232 = vunpack.c.l.bf16 %v231
    %v233 = vpack.c.bf16 %v229, %v229
    %v238 = vunpack.c.l.b16 %v225
    %v239 = vunpack.c.l.b16 %v226
    %v240 = vunpack.c.l.b16 %v227
    %v241 = vunpack.c.l.b16 %v228
    %v242 = vpack.c.b16 %v239, %v238
    %v243 = vpack.c.b16 %v241, %v240
    %v247 = vsel %vm107, %v233, 0
    %249 = vmatprep.subr.bf16.mxu0 0
    %250 = vmatpush1.bf16.msra.mxu0 0
    %251 = vmatprep.subr.bf16.mxu0 0
    %252 = vmatpush1.bf16.msra.mxu0 0
    %253 = vmatprep.subr.bf16.mxu0 0
    %254 = vmatpush1.bf16.msra.mxu0 0
    %255 = vmatprep.subr.bf16.mxu0 0
    %256 = vmatpush1.bf16.msra.mxu0 0
    %257 = vmatprep.subr.bf16.mxu0 0
    %258 = vmatpush1.bf16.msra.mxu0 0
    %259 = vmatprep.subr.bf16.mxu0 0
    %260 = vmatpush1.bf16.msra.mxu0 0
    %261 = vmatprep.subr.bf16.mxu0 0
    %262 = vmatpush1.bf16.msra.mxu0 %v243
    %263 = vmatprep.subr.bf16.mxu0 0
    %264 = vmatpush1.bf16.msra.mxu0 %v242
    %265 = vmatprep.subr.bf16.mxu0 0
    %266 = vmatpush2.bf16.msra.mxu0 0
    %267 = vmatprep.subr.bf16.mxu0 0
    %268 = vmatpush2.bf16.msra.mxu0 0
    %269 = vmatprep.subr.bf16.mxu0 0
    %270 = vmatpush2.bf16.msra.mxu0 0
    %271 = vmatprep.subr.bf16.mxu0 0
    %272 = vmatpush2.bf16.msra.mxu0 0
    %273 = vmatprep.subr.bf16.mxu0 0
    %274 = vmatpush2.bf16.msra.mxu0 0
    %275 = vmatprep.subr.bf16.mxu0 0
    %276 = vmatpush2.bf16.msra.mxu0 0
    %277 = vmatprep.subr.bf16.mxu0 0
    %278 = vmatpush2.bf16.msra.mxu0 0
    %279 = vmatprep.subr.bf16.mxu0 0
    %280 = vmatpush2.bf16.msra.mxu0 0
    %281 = vmatprep.mubr.bf16.mxu0 0
    %282 = vmatmul.mubr.bf16.gmra.mxu0 %v247
    %v283 = vpop.f32.mrf.mxu0
    %v284 = vadd.f32 0.0, %v283
    %v285 = vpop.f32.mrf.mxu0
    %v286 = vpop.f32.mrf.mxu0
    %v287 = vpop.f32.mrf.mxu0
    %288 = vdwg.mxu0
    %v289 = vadd.f32 %v232, %v284
    %v290 = vmul.f32 %v289, 0.5
    %v291 = vtanh.pop %v290
    %v292 = vadd.f32 %v291, 1.0
    %v293 = vmul.f32 %v292, 0.5
    %v294 = vtanh.pop %v289
    %296 = vrot.lane.b32.xlu0 %v230, 32
    %v297 = vpop.permute.xlu0 %296
    %v299 = vmul.f32 %v293, %v297
    %301 = vrot.lane.b32.xlu0 %v294, 64
    %v302 = vpop.permute.xlu0 %301
    %v304 = vmul.f32 %v293, %v302
    %306 = vrot.lane.b32.xlu0 %v304, 32
    %v307 = vpop.permute.xlu0 %306
    %v309 = vadd.f32 %v299, %v307
    %v310 = vtanh.pop %v309
    %312 = vrot.lane.b32.xlu0 %v310, 64
    %v313 = vpop.permute.xlu0 %312
    %v315 = vmul.f32 %v293, %v313
    %s316 = scalar_lea.vmem [#allocation2], 4
    %v317 = vld [vmem:[%s316] sm:$0xf]
    %v318 = vunpack.c.l.bf16 %v317
    %v319 = vpack.c.bf16 %v315, %v315
    %321 = vrot.lane.b32.xlu0 %v319, 32
    %v322 = vpop.permute.xlu0 %321
    %v324 = vsel %vm107, %v322, 0
    %326 = vmatprep.subr.bf16.mxu0 0
    %327 = vmatpush1.bf16.msra.mxu0 0
    %328 = vmatprep.subr.bf16.mxu0 0
    %329 = vmatpush1.bf16.msra.mxu0 0
    %330 = vmatprep.subr.bf16.mxu0 0
    %331 = vmatpush1.bf16.msra.mxu0 0
    %332 = vmatprep.subr.bf16.mxu0 0
    %333 = vmatpush1.bf16.msra.mxu0 0
    %334 = vmatprep.subr.bf16.mxu0 0
    %335 = vmatpush1.bf16.msra.mxu0 0
    %336 = vmatprep.subr.bf16.mxu0 0
    %337 = vmatpush1.bf16.msra.mxu0 0
    %338 = vmatprep.subr.bf16.mxu0 0
    %339 = vmatpush1.bf16.msra.mxu0 %v243
    %340 = vmatprep.subr.bf16.mxu0 0
    %341 = vmatpush1.bf16.msra.mxu0 %v242
    %342 = vmatprep.subr.bf16.mxu0 0
    %343 = vmatpush2.bf16.msra.mxu0 0
    %344 = vmatprep.subr.bf16.mxu0 0
    %345 = vmatpush2.bf16.msra.mxu0 0
    %346 = vmatprep.subr.bf16.mxu0 0
    %347 = vmatpush2.bf16.msra.mxu0 0
    %348 = vmatprep.subr.bf16.mxu0 0
    %349 = vmatpush2.bf16.msra.mxu0 0
    %350 = vmatprep.subr.bf16.mxu0 0
    %351 = vmatpush2.bf16.msra.mxu0 0
    %352 = vmatprep.subr.bf16.mxu0 0
    %353 = vmatpush2.bf16.msra.mxu0 0
    %354 = vmatprep.subr.bf16.mxu0 0
    %355 = vmatpush2.bf16.msra.mxu0 0
    %356 = vmatprep.subr.bf16.mxu0 0
    %357 = vmatpush2.bf16.msra.mxu0 0
    %358 = vmatprep.mubr.bf16.mxu0 0
    %359 = vmatmul.mubr.bf16.gmra.mxu0 %v324
    %v360 = vpop.f32.mrf.mxu0
    %v361 = vadd.f32 0.0, %v360
    %v362 = vpop.f32.mrf.mxu0
    %v363 = vpop.f32.mrf.mxu0
    %v364 = vpop.f32.mrf.mxu0
    %365 = vdwg.mxu0
    %v366 = vadd.f32 %v318, %v361
    %v367 = vmul.f32 %v366, 0.5
    %v368 = vtanh.pop %v367
    %v369 = vadd.f32 %v368, 1.0
    %v370 = vmul.f32 %v369, 0.5
    %v371 = vtanh.pop %v366
    %v372 = vmul.f32 %v370, %v309
    %374 = vrot.lane.b32.xlu0 %v371, 64
    %v375 = vpop.permute.xlu0 %374
    %v377 = vmul.f32 %v370, %v375
    %379 = vrot.lane.b32.xlu0 %v377, 32
    %v380 = vpop.permute.xlu0 %379
    %v382 = vadd.f32 %v372, %v380
    %v383 = vtanh.pop %v382
    %385 = vrot.lane.b32.xlu0 %v383, 64
    %v386 = vpop.permute.xlu0 %385
    %v388 = vmul.f32 %v370, %v386
    %s389 = scalar_lea.vmem [#allocation2], 8
    %v390 = vld [vmem:[%s389] sm:$0xf]
    %v391 = vunpack.c.l.bf16 %v390
    %v392 = vpack.c.bf16 %v388, %v388
    %394 = vrot.lane.b32.xlu0 %v392, 32
    %v395 = vpop.permute.xlu0 %394
    %v397 = vsel %vm107, %v395, 0
    %399 = vmatprep.subr.bf16.mxu0 0
    %400 = vmatpush1.bf16.msra.mxu0 0
    %401 = vmatprep.subr.bf16.mxu0 0
    %402 = vmatpush1.bf16.msra.mxu0 0
    %403 = vmatprep.subr.bf16.mxu0 0
    %404 = vmatpush1.bf16.msra.mxu0 0
    %405 = vmatprep.subr.bf16.mxu0 0
    %406 = vmatpush1.bf16.msra.mxu0 0
    %407 = vmatprep.subr.bf16.mxu0 0
    %408 = vmatpush1.bf16.msra.mxu0 0
    %409 = vmatprep.subr.bf16.mxu0 0
    %410 = vmatpush1.bf16.msra.mxu0 0
    %411 = vmatprep.subr.bf16.mxu0 0
    %412 = vmatpush1.bf16.msra.mxu0 %v243
    %413 = vmatprep.subr.bf16.mxu0 0
    %414 = vmatpush1.bf16.msra.mxu0 %v242
    %415 = vmatprep.subr.bf16.mxu0 0
    %416 = vmatpush2.bf16.msra.mxu0 0
    %417 = vmatprep.subr.bf16.mxu0 0
    %418 = vmatpush2.bf16.msra.mxu0 0
    %419 = vmatprep.subr.bf16.mxu0 0
    %420 = vmatpush2.bf16.msra.mxu0 0
    %421 = vmatprep.subr.bf16.mxu0 0
    %422 = vmatpush2.bf16.msra.mxu0 0
    %423 = vmatprep.subr.bf16.mxu0 0
    %424 = vmatpush2.bf16.msra.mxu0 0
    %425 = vmatprep.subr.bf16.mxu0 0
    %426 = vmatpush2.bf16.msra.mxu0 0
    %427 = vmatprep.subr.bf16.mxu0 0
    %428 = vmatpush2.bf16.msra.mxu0 0
    %429 = vmatprep.subr.bf16.mxu0 0
    %430 = vmatpush2.bf16.msra.mxu0 0
    %431 = vmatprep.mubr.bf16.mxu0 0
    %432 = vmatmul.mubr.bf16.gmra.mxu0 %v397
    %v433 = vpop.f32.mrf.mxu0
    %v434 = vadd.f32 0.0, %v433
    %v435 = vpop.f32.mrf.mxu0
    %v436 = vpop.f32.mrf.mxu0
    %v437 = vpop.f32.mrf.mxu0
    %438 = vdwg.mxu0
    %v439 = vadd.f32 %v391, %v434
    %v440 = vmul.f32 %v439, 0.5
    %v441 = vtanh.pop %v440
    %v442 = vadd.f32 %v441, 1.0
    %v443 = vmul.f32 %v442, 0.5
    %v444 = vtanh.pop %v439
    %v445 = vmul.f32 %v443, %v382
    %447 = vrot.lane.b32.xlu0 %v444, 64
    %v448 = vpop.permute.xlu0 %447
    %v450 = vmul.f32 %v443, %v448
    %452 = vrot.lane.b32.xlu0 %v450, 32
    %v453 = vpop.permute.xlu0 %452
    %v455 = vadd.f32 %v445, %v453
    %v456 = vtanh.pop %v455
    %458 = vrot.lane.b32.xlu0 %v456, 64
    %v459 = vpop.permute.xlu0 %458
    %v461 = vmul.f32 %v443, %v459
    %s462 = scalar_lea.vmem [#allocation2], 12
    %v463 = vld [vmem:[%s462] sm:$0xf]
    %v464 = vunpack.c.l.bf16 %v463
    %v465 = vpack.c.bf16 %v461, %v461
    %467 = vrot.lane.b32.xlu0 %v465, 32
    %v468 = vpop.permute.xlu0 %467
    %v470 = vsel %vm107, %v468, 0
    %472 = vmatprep.subr.bf16.mxu0 0
    %473 = vmatpush1.bf16.msra.mxu0 0
    %474 = vmatprep.subr.bf16.mxu0 0
    %475 = vmatpush1.bf16.msra.mxu0 0
    %476 = vmatprep.subr.bf16.mxu0 0
    %477 = vmatpush1.bf16.msra.mxu0 0
    %478 = vmatprep.subr.bf16.mxu0 0
    %479 = vmatpush1.bf16.msra.mxu0 0
    %480 = vmatprep.subr.bf16.mxu0 0
    %481 = vmatpush1.bf16.msra.mxu0 0
    %482 = vmatprep.subr.bf16.mxu0 0
    %483 = vmatpush1.bf16.msra.mxu0 0
    %484 = vmatprep.subr.bf16.mxu0 0
    %485 = vmatpush1.bf16.msra.mxu0 %v243
    %486 = vmatprep.subr.bf16.mxu0 0
    %487 = vmatpush1.bf16.msra.mxu0 %v242
    %488 = vmatprep.subr.bf16.mxu0 0
    %489 = vmatpush2.bf16.msra.mxu0 0
    %490 = vmatprep.subr.bf16.mxu0 0
    %491 = vmatpush2.bf16.msra.mxu0 0
    %492 = vmatprep.subr.bf16.mxu0 0
    %493 = vmatpush2.bf16.msra.mxu0 0
    %494 = vmatprep.subr.bf16.mxu0 0
    %495 = vmatpush2.bf16.msra.mxu0 0
    %496 = vmatprep.subr.bf16.mxu0 0
    %497 = vmatpush2.bf16.msra.mxu0 0
    %498 = vmatprep.subr.bf16.mxu0 0
    %499 = vmatpush2.bf16.msra.mxu0 0
    %500 = vmatprep.subr.bf16.mxu0 0
    %501 = vmatpush2.bf16.msra.mxu0 0
    %502 = vmatprep.subr.bf16.mxu0 0
    %503 = vmatpush2.bf16.msra.mxu0 0
    %504 = vmatprep.mubr.bf16.mxu0 0
    %505 = vmatmul.mubr.bf16.gmra.mxu0 %v470
    %v506 = vpop.f32.mrf.mxu0
    %v507 = vadd.f32 0.0, %v506
    %v508 = vpop.f32.mrf.mxu0
    %v509 = vpop.f32.mrf.mxu0
    %v510 = vpop.f32.mrf.mxu0
    %511 = vdwg.mxu0
    %v512 = vadd.f32 %v464, %v507
    %v513 = vmul.f32 %v512, 0.5
    %v514 = vtanh.pop %v513
    %v515 = vadd.f32 %v514, 1.0
    %v516 = vmul.f32 %v515, 0.5
    %v517 = vtanh.pop %v512
    %v518 = vmul.f32 %v516, %v455
    %520 = vrot.lane.b32.xlu0 %v517, 64
    %v521 = vpop.permute.xlu0 %520
    %v523 = vmul.f32 %v516, %v521
    %525 = vrot.lane.b32.xlu0 %v523, 32
    %v526 = vpop.permute.xlu0 %525
    %v528 = vadd.f32 %v518, %v526
    %v529 = vtanh.pop %v528
    %531 = vrot.lane.b32.xlu0 %v529, 64
    %v532 = vpop.permute.xlu0 %531
    %v534 = vmul.f32 %v516, %v532
    %s535 = scalar_lea.vmem [#allocation2], 16
    %v536 = vld [vmem:[%s535] sm:$0xf]
    %v537 = vunpack.c.l.bf16 %v536
    %v538 = vpack.c.bf16 %v534, %v534
    %540 = vrot.lane.b32.xlu0 %v538, 32
    %v541 = vpop.permute.xlu0 %540
    %v543 = vsel %vm107, %v541, 0
    %545 = vmatprep.subr.bf16.mxu0 0
    %546 = vmatpush1.bf16.msra.mxu0 0
    %547 = vmatprep.subr.bf16.mxu0 0
    %548 = vmatpush1.bf16.msra.mxu0 0
    %549 = vmatprep.subr.bf16.mxu0 0
    %550 = vmatpush1.bf16.msra.mxu0 0
    %551 = vmatprep.subr.bf16.mxu0 0
    %552 = vmatpush1.bf16.msra.mxu0 0
    %553 = vmatprep.subr.bf16.mxu0 0
    %554 = vmatpush1.bf16.msra.mxu0 0
    %555 = vmatprep.subr.bf16.mxu0 0
    %556 = vmatpush1.bf16.msra.mxu0 0
    %557 = vmatprep.subr.bf16.mxu0 0
    %558 = vmatpush1.bf16.msra.mxu0 %v243
    %559 = vmatprep.subr.bf16.mxu0 0
    %560 = vmatpush1.bf16.msra.mxu0 %v242
    %561 = vmatprep.subr.bf16.mxu0 0
    %562 = vmatpush2.bf16.msra.mxu0 0
    %563 = vmatprep.subr.bf16.mxu0 0
    %564 = vmatpush2.bf16.msra.mxu0 0
    %565 = vmatprep.subr.bf16.mxu0 0
    %566 = vmatpush2.bf16.msra.mxu0 0
    %567 = vmatprep.subr.bf16.mxu0 0
    %568 = vmatpush2.bf16.msra.mxu0 0
    %569 = vmatprep.subr.bf16.mxu0 0
    %570 = vmatpush2.bf16.msra.mxu0 0
    %571 = vmatprep.subr.bf16.mxu0 0
    %572 = vmatpush2.bf16.msra.mxu0 0
    %573 = vmatprep.subr.bf16.mxu0 0
    %574 = vmatpush2.bf16.msra.mxu0 0
    %575 = vmatprep.subr.bf16.mxu0 0
    %576 = vmatpush2.bf16.msra.mxu0 0
    %577 = vmatprep.mubr.bf16.mxu0 0
    %578 = vmatmul.mubr.bf16.gmra.mxu0 %v543
    %v579 = vpop.f32.mrf.mxu0
    %v580 = vadd.f32 0.0, %v579
    %v581 = vpop.f32.mrf.mxu0
    %v582 = vpop.f32.mrf.mxu0
    %v583 = vpop.f32.mrf.mxu0
    %584 = vdwg.mxu0
    %v585 = vadd.f32 %v537, %v580
    %v586 = vmul.f32 %v585, 0.5
    %v587 = vtanh.pop %v586
    %v588 = vadd.f32 %v587, 1.0
    %v589 = vmul.f32 %v588, 0.5
    %v590 = vtanh.pop %v585
    %v591 = vmul.f32 %v589, %v528
    %593 = vrot.lane.b32.xlu0 %v590, 64
    %v594 = vpop.permute.xlu0 %593
    %v596 = vmul.f32 %v589, %v594
    %598 = vrot.lane.b32.xlu0 %v596, 32
    %v599 = vpop.permute.xlu0 %598
    %v601 = vadd.f32 %v591, %v599
    %v602 = vtanh.pop %v601
    %604 = vrot.lane.b32.xlu0 %v602, 64
    %v605 = vpop.permute.xlu0 %604
    %v607 = vmul.f32 %v589, %v605
    %s608 = scalar_lea.vmem [#allocation2], 20
    %v609 = vld [vmem:[%s608] sm:$0xf]
    %v610 = vunpack.c.l.bf16 %v609
    %v611 = vpack.c.bf16 %v607, %v607
    %613 = vrot.lane.b32.xlu0 %v611, 32
    %v614 = vpop.permute.xlu0 %613
    %v616 = vsel %vm107, %v614, 0
    %618 = vmatprep.subr.bf16.mxu0 0
    %619 = vmatpush1.bf16.msra.mxu0 0
    %620 = vmatprep.subr.bf16.mxu0 0
    %621 = vmatpush1.bf16.msra.mxu0 0
    %622 = vmatprep.subr.bf16.mxu0 0
    %623 = vmatpush1.bf16.msra.mxu0 0
    %624 = vmatprep.subr.bf16.mxu0 0
    %625 = vmatpush1.bf16.msra.mxu0 0
    %626 = vmatprep.subr.bf16.mxu0 0
    %627 = vmatpush1.bf16.msra.mxu0 0
    %628 = vmatprep.subr.bf16.mxu0 0
    %629 = vmatpush1.bf16.msra.mxu0 0
    %630 = vmatprep.subr.bf16.mxu0 0
    %631 = vmatpush1.bf16.msra.mxu0 %v243
    %632 = vmatprep.subr.bf16.mxu0 0
    %633 = vmatpush1.bf16.msra.mxu0 %v242
    %634 = vmatprep.subr.bf16.mxu0 0
    %635 = vmatpush2.bf16.msra.mxu0 0
    %636 = vmatprep.subr.bf16.mxu0 0
    %637 = vmatpush2.bf16.msra.mxu0 0
    %638 = vmatprep.subr.bf16.mxu0 0
    %639 = vmatpush2.bf16.msra.mxu0 0
    %640 = vmatprep.subr.bf16.mxu0 0
    %641 = vmatpush2.bf16.msra.mxu0 0
    %642 = vmatprep.subr.bf16.mxu0 0
    %643 = vmatpush2.bf16.msra.mxu0 0
    %644 = vmatprep.subr.bf16.mxu0 0
    %645 = vmatpush2.bf16.msra.mxu0 0
    %646 = vmatprep.subr.bf16.mxu0 0
    %647 = vmatpush2.bf16.msra.mxu0 0
    %648 = vmatprep.subr.bf16.mxu0 0
    %649 = vmatpush2.bf16.msra.mxu0 0
    %650 = vmatprep.mubr.bf16.mxu0 0
    %651 = vmatmul.mubr.bf16.gmra.mxu0 %v616
    %v652 = vpop.f32.mrf.mxu0
    %v653 = vadd.f32 0.0, %v652
    %v654 = vpop.f32.mrf.mxu0
    %v655 = vpop.f32.mrf.mxu0
    %v656 = vpop.f32.mrf.mxu0
    %657 = vdwg.mxu0
    %v658 = vadd.f32 %v610, %v653
    %v659 = vmul.f32 %v658, 0.5
    %v660 = vtanh.pop %v659
    %v661 = vadd.f32 %v660, 1.0
    %v662 = vmul.f32 %v661, 0.5
    %v663 = vtanh.pop %v658
    %v664 = vmul.f32 %v662, %v601
    %666 = vrot.lane.b32.xlu0 %v663, 64
    %v667 = vpop.permute.xlu0 %666
    %v669 = vmul.f32 %v662, %v667
    %671 = vrot.lane.b32.xlu0 %v669, 32
    %v672 = vpop.permute.xlu0 %671
    %v674 = vadd.f32 %v664, %v672
    %v675 = vtanh.pop %v674
    %677 = vrot.lane.b32.xlu0 %v675, 64
    %v678 = vpop.permute.xlu0 %677
    %v680 = vmul.f32 %v662, %v678
    %s681 = scalar_lea.vmem [#allocation2], 24
    %v682 = vld [vmem:[%s681] sm:$0xf]
    %v683 = vunpack.c.l.bf16 %v682
    %v684 = vpack.c.bf16 %v680, %v680
    %686 = vrot.lane.b32.xlu0 %v684, 32
    %v687 = vpop.permute.xlu0 %686
    %v689 = vsel %vm107, %v687, 0
    %691 = vmatprep.subr.bf16.mxu0 0
    %692 = vmatpush1.bf16.msra.mxu0 0
    %693 = vmatprep.subr.bf16.mxu0 0
    %694 = vmatpush1.bf16.msra.mxu0 0
    %695 = vmatprep.subr.bf16.mxu0 0
    %696 = vmatpush1.bf16.msra.mxu0 0
    %697 = vmatprep.subr.bf16.mxu0 0
    %698 = vmatpush1.bf16.msra.mxu0 0
    %699 = vmatprep.subr.bf16.mxu0 0
    %700 = vmatpush1.bf16.msra.mxu0 0
    %701 = vmatprep.subr.bf16.mxu0 0
    %702 = vmatpush1.bf16.msra.mxu0 0
    %703 = vmatprep.subr.bf16.mxu0 0
    %704 = vmatpush1.bf16.msra.mxu0 %v243
    %705 = vmatprep.subr.bf16.mxu0 0
    %706 = vmatpush1.bf16.msra.mxu0 %v242
    %707 = vmatprep.subr.bf16.mxu0 0
    %708 = vmatpush2.bf16.msra.mxu0 0
    %709 = vmatprep.subr.bf16.mxu0 0
    %710 = vmatpush2.bf16.msra.mxu0 0
    %711 = vmatprep.subr.bf16.mxu0 0
    %712 = vmatpush2.bf16.msra.mxu0 0
    %713 = vmatprep.subr.bf16.mxu0 0
    %714 = vmatpush2.bf16.msra.mxu0 0
    %715 = vmatprep.subr.bf16.mxu0 0
    %716 = vmatpush2.bf16.msra.mxu0 0
    %717 = vmatprep.subr.bf16.mxu0 0
    %718 = vmatpush2.bf16.msra.mxu0 0
    %719 = vmatprep.subr.bf16.mxu0 0
    %720 = vmatpush2.bf16.msra.mxu0 0
    %721 = vmatprep.subr.bf16.mxu0 0
    %722 = vmatpush2.bf16.msra.mxu0 0
    %723 = vmatprep.mubr.bf16.mxu0 0
    %724 = vmatmul.mubr.bf16.gmra.mxu0 %v689
    %v725 = vpop.f32.mrf.mxu0
    %v726 = vadd.f32 0.0, %v725
    %v727 = vpop.f32.mrf.mxu0
    %v728 = vpop.f32.mrf.mxu0
    %v729 = vpop.f32.mrf.mxu0
    %730 = vdwg.mxu0
    %v731 = vadd.f32 %v683, %v726
    %v732 = vmul.f32 %v731, 0.5
    %v733 = vtanh.pop %v732
    %v734 = vadd.f32 %v733, 1.0
    %v735 = vmul.f32 %v734, 0.5
    %v736 = vtanh.pop %v731
    %v737 = vmul.f32 %v735, %v674
    %739 = vrot.lane.b32.xlu0 %v736, 64
    %v740 = vpop.permute.xlu0 %739
    %v742 = vmul.f32 %v735, %v740
    %744 = vrot.lane.b32.xlu0 %v742, 32
    %v745 = vpop.permute.xlu0 %744
    %v747 = vadd.f32 %v737, %v745
    %v748 = vtanh.pop %v747
    %750 = vrot.lane.b32.xlu0 %v748, 64
    %v751 = vpop.permute.xlu0 %750
    %v753 = vmul.f32 %v735, %v751
    %s754 = scalar_lea.vmem [#allocation2], 28
    %v755 = vld [vmem:[%s754] sm:$0xf]
    %v756 = vunpack.c.l.bf16 %v755
    %v757 = vpack.c.bf16 %v753, %v753
    %759 = vrot.lane.b32.xlu0 %v757, 32
    %v760 = vpop.permute.xlu0 %759
    %v762 = vsel %vm107, %v760, 0
    %764 = vmatprep.subr.bf16.mxu0 0
    %765 = vmatpush1.bf16.msra.mxu0 0
    %766 = vmatprep.subr.bf16.mxu0 0
    %767 = vmatpush1.bf16.msra.mxu0 0
    %768 = vmatprep.subr.bf16.mxu0 0
    %769 = vmatpush1.bf16.msra.mxu0 0
    %770 = vmatprep.subr.bf16.mxu0 0
    %771 = vmatpush1.bf16.msra.mxu0 0
    %772 = vmatprep.subr.bf16.mxu0 0
    %773 = vmatpush1.bf16.msra.mxu0 0
    %774 = vmatprep.subr.bf16.mxu0 0
    %775 = vmatpush1.bf16.msra.mxu0 0
    %776 = vmatprep.subr.bf16.mxu0 0
    %777 = vmatpush1.bf16.msra.mxu0 %v243
    %778 = vmatprep.subr.bf16.mxu0 0
    %779 = vmatpush1.bf16.msra.mxu0 %v242
    %780 = vmatprep.subr.bf16.mxu0 0
    %781 = vmatpush2.bf16.msra.mxu0 0
    %782 = vmatprep.subr.bf16.mxu0 0
    %783 = vmatpush2.bf16.msra.mxu0 0
    %784 = vmatprep.subr.bf16.mxu0 0
    %785 = vmatpush2.bf16.msra.mxu0 0
    %786 = vmatprep.subr.bf16.mxu0 0
    %787 = vmatpush2.bf16.msra.mxu0 0
    %788 = vmatprep.subr.bf16.mxu0 0
    %789 = vmatpush2.bf16.msra.mxu0 0
    %790 = vmatprep.subr.bf16.mxu0 0
    %791 = vmatpush2.bf16.msra.mxu0 0
    %792 = vmatprep.subr.bf16.mxu0 0
    %793 = vmatpush2.bf16.msra.mxu0 0
    %794 = vmatprep.subr.bf16.mxu0 0
    %795 = vmatpush2.bf16.msra.mxu0 0
    %796 = vmatprep.mubr.bf16.mxu0 0
    %797 = vmatmul.mubr.bf16.gmra.mxu0 %v762
    %v798 = vpop.f32.mrf.mxu0
    %v799 = vadd.f32 0.0, %v798
    %v800 = vpop.f32.mrf.mxu0
    %v801 = vpop.f32.mrf.mxu0
    %v802 = vpop.f32.mrf.mxu0
    %803 = vdwg.mxu0
    %v804 = vadd.f32 %v756, %v799
    %v805 = vmul.f32 %v804, 0.5
    %v806 = vtanh.pop %v805
    %v807 = vadd.f32 %v806, 1.0
    %v808 = vmul.f32 %v807, 0.5
    %v809 = vtanh.pop %v804
    %v810 = vmul.f32 %v808, %v747
    %812 = vrot.lane.b32.xlu0 %v809, 64
    %v813 = vpop.permute.xlu0 %812
    %v815 = vmul.f32 %v808, %v813
    %817 = vrot.lane.b32.xlu0 %v815, 32
    %v818 = vpop.permute.xlu0 %817
    %v820 = vadd.f32 %v810, %v818
    %v821 = vtanh.pop %v820
    %823 = vrot.lane.b32.xlu0 %v821, 64
    %v824 = vpop.permute.xlu0 %823
    %v826 = vmul.f32 %v808, %v824
    %828 = vrot.lane.b32.xlu0 %v826, 32
    %v829 = vpop.permute.xlu0 %828
    %831 = vst.msk [vmem:[#allocation3] sm:$0xff] %vm107, %v829
    %833 = vrot.lane.b32.xlu0 %v820, 96
    %v834 = vpop.permute.xlu0 %833
    %836 = vst.msk [vmem:[#allocation4] sm:$0xff] %vm107, %v834
    // Predicated region
    $region46: #{tpu_custom_call.1} parent=1 // pred_check
      %p837 = pneg %p49
    $region47: #{tpu_custom_call.1} parent=1 // pred_check_branch
      %839 = sbr.rel (%p837) target = $region49
    $region48: #{tpu_custom_call.1} parent=1 // pred_region
      %s840 = scalar_lea.vmem %s0, 28
      %v841 = vld [vmem:[%s840] sm:$0xf]
      %v842 = vld [vmem:[#allocation6] sm:$0xf]
      %v843 = vld [vmem:[#allocation6 + $0x4] sm:$0xf]
      %v844 = vld [vmem:[#allocation6 + $0x8] sm:$0xf]
      %v845 = vld [vmem:[#allocation6 + $0xc] sm:$0xf]
      %v846 = vld [vmem:[%s5] sm:$0x1]
      %v848 = vlaneseq
      %v849 = vshrl.u32 %v848, 7
      %v850 = vsub.s32 0, %v849
      %v851 = vrot.slane %v846, %v850
      %v857 = vunpack.c.l.b16 %v842
      %v858 = vunpack.c.l.b16 %v843
      %v859 = vunpack.c.l.b16 %v844
      %v860 = vunpack.c.l.b16 %v845
      %v861 = vpack.c.b16 %v858, %v857
      %v862 = vpack.c.b16 %v860, %v859
      %v866 = vsel %vm107, %v841, 0
      %868 = vmatprep.subr.bf16.mxu0 0
      %869 = vmatpush1.bf16.msra.mxu0 0
      %870 = vmatprep.subr.bf16.mxu0 0
      %871 = vmatpush1.bf16.msra.mxu0 0
      %872 = vmatprep.subr.bf16.mxu0 0
      %873 = vmatpush1.bf16.msra.mxu0 0
      %874 = vmatprep.subr.bf16.mxu0 0
      %875 = vmatpush1.bf16.msra.mxu0 0
      %876 = vmatprep.subr.bf16.mxu0 0
      %877 = vmatpush1.bf16.msra.mxu0 0
      %878 = vmatprep.subr.bf16.mxu0 0
      %879 = vmatpush1.bf16.msra.mxu0 0
      %880 = vmatprep.subr.bf16.mxu0 0
      %881 = vmatpush1.bf16.msra.mxu0 %v862
      %882 = vmatprep.subr.bf16.mxu0 0
      %883 = vmatpush1.bf16.msra.mxu0 %v861
      %884 = vmatprep.subr.bf16.mxu0 0
      %885 = vmatpush2.bf16.msra.mxu0 0
      %886 = vmatprep.subr.bf16.mxu0 0
      %887 = vmatpush2.bf16.msra.mxu0 0
      %888 = vmatprep.subr.bf16.mxu0 0
      %889 = vmatpush2.bf16.msra.mxu0 0
      %890 = vmatprep.subr.bf16.mxu0 0
      %891 = vmatpush2.bf16.msra.mxu0 0
      %892 = vmatprep.subr.bf16.mxu0 0
      %893 = vmatpush2.bf16.msra.mxu0 0
      %894 = vmatprep.subr.bf16.mxu0 0
      %895 = vmatpush2.bf16.msra.mxu0 0
      %896 = vmatprep.subr.bf16.mxu0 0
      %897 = vmatpush2.bf16.msra.mxu0 0
      %898 = vmatprep.subr.bf16.mxu0 0
      %899 = vmatpush2.bf16.msra.mxu0 0
      %900 = vmatprep.mubr.bf16.mxu0 0
      %901 = vmatmul.mubr.bf16.gmra.mxu0 %v866
      %v902 = vpop.f32.mrf.mxu0
      %v903 = vadd.f32 %v851, %v902
      %v904 = vpop.f32.mrf.mxu0
      %v905 = vpop.f32.mrf.mxu0
      %v906 = vpop.f32.mrf.mxu0
      %907 = vdwg.mxu0
      %v908 = vmul.f32 %v903, 0.5
      %v909 = vtanh.pop %v908
      %v910 = vadd.f32 %v909, 1.0
      %v911 = vmul.f32 %v910, 0.5
      %v912 = vtanh.pop %v903
      %914 = vrot.lane.b32.xlu0 %v912, 96
      %v915 = vpop.permute.xlu0 %914
      %v917 = vmul.f32 %v911, %v915
      %v918 = vtanh.pop %v917
      %920 = vrot.lane.b32.xlu0 %v918, 64
      %v921 = vpop.permute.xlu0 %920
      %v923 = vmul.f32 %v911, %v921
      %v924 = vld [vmem:[%s6] sm:$0xff]
      %v925 = vld [vmem:[%s6 + $0x8] sm:$0xff]
      %v926 = vld [vmem:[%s6 + $0x10] sm:$0xff]
      %v927 = vld [vmem:[%s6 + $0x18] sm:$0xff]
      %v928 = vld [vmem:[%s7] sm:$0xff]
      %v929 = vld [vmem:[%s7 + $0x8] sm:$0xff]
      %v930 = vld [vmem:[%s7 + $0x10] sm:$0xff]
      %v931 = vld [vmem:[%s7 + $0x18] sm:$0xff]
      %933 = vrot.lane.b32.xlu0 %v923, 64
      %v934 = vpop.permute.xlu0 %933
      %v935 = vsel %vm107, %v934, 0
      %937 = vmatprep.subr.mxu0 0.0
      %938 = vmatpush1.msra.mxu0 0.0
      %939 = vmatprep.subr.mxu0 0.0
      %940 = vmatpush1.msra.mxu0 0.0
      %941 = vmatprep.subr.mxu0 0.0
      %942 = vmatpush1.msra.mxu0 0.0
      %943 = vmatprep.subr.mxu0 0.0
      %944 = vmatpush1.msra.mxu0 0.0
      %945 = vmatprep.subr.mxu0 0.0
      %946 = vmatpush1.msra.mxu0 0.0
      %947 = vmatprep.subr.mxu0 0.0
      %948 = vmatpush1.msra.mxu0 0.0
      %949 = vmatprep.subr.mxu0 0.0
      %950 = vmatpush1.msra.mxu0 0.0
      %951 = vmatprep.subr.mxu0 0.0
      %952 = vmatpush1.msra.mxu0 0.0
      %953 = vmatprep.subr.mxu0 0.0
      %954 = vmatpush1.msra.mxu0 0.0
      %955 = vmatprep.subr.mxu0 0.0
      %956 = vmatpush1.msra.mxu0 0.0
      %957 = vmatprep.subr.mxu0 0.0
      %958 = vmatpush1.msra.mxu0 0.0
      %959 = vmatprep.subr.mxu0 0.0
      %960 = vmatpush1.msra.mxu0 0.0
      %961 = vmatprep.subr.mxu0 0.0
      %962 = vmatpush1.msra.mxu0 %v931
      %963 = vmatprep.subr.mxu0 0.0
      %964 = vmatpush1.msra.mxu0 %v930
      %965 = vmatprep.subr.mxu0 0.0
      %966 = vmatpush1.msra.mxu0 %v929
      %967 = vmatprep.subr.mxu0 0.0
      %968 = vmatpush1.msra.mxu0 %v928
      %969 = vmatprep.subr.mxu0 0.0
      %970 = vmatpush2.msra.mxu0 0.0
      %971 = vmatprep.subr.mxu0 0.0
      %972 = vmatpush2.msra.mxu0 0.0
      %973 = vmatprep.subr.mxu0 0.0
      %974 = vmatpush2.msra.mxu0 0.0
      %975 = vmatprep.subr.mxu0 0.0
      %976 = vmatpush2.msra.mxu0 0.0
      %977 = vmatprep.subr.mxu0 0.0
      %978 = vmatpush2.msra.mxu0 0.0
      %979 = vmatprep.subr.mxu0 0.0
      %980 = vmatpush2.msra.mxu0 0.0
      %981 = vmatprep.subr.mxu0 0.0
      %982 = vmatpush2.msra.mxu0 0.0
      %983 = vmatprep.subr.mxu0 0.0
      %984 = vmatpush2.msra.mxu0 0.0
      %985 = vmatprep.subr.mxu0 0.0
      %986 = vmatpush2.msra.mxu0 0.0
      %987 = vmatprep.subr.mxu0 0.0
      %988 = vmatpush2.msra.mxu0 0.0
      %989 = vmatprep.subr.mxu0 0.0
      %990 = vmatpush2.msra.mxu0 0.0
      %991 = vmatprep.subr.mxu0 0.0
      %992 = vmatpush2.msra.mxu0 0.0
      %993 = vmatprep.subr.mxu0 0.0
      %994 = vmatpush2.msra.mxu0 0.0
      %995 = vmatprep.subr.mxu0 0.0
      %996 = vmatpush2.msra.mxu0 0.0
      %997 = vmatprep.subr.mxu0 0.0
      %998 = vmatpush2.msra.mxu0 0.0
      %999 = vmatprep.subr.mxu0 0.0
      %1000 = vmatpush2.msra.mxu0 0.0
      %1001 = vmatprep.mubr.f32.mxu0 0.0
      %1002 = vmatmul.mubr.f32.gmra.mxu0 %v935
      %v1003 = vpop.f32.mrf.mxu0
      %v1004 = vadd.f32 0.0, %v1003
      %v1005 = vpop.f32.mrf.mxu0
      %1006 = vdwg.mxu0
      %v1007 = vsel %vm107, %v829, 0
      %1009 = vmatprep.subr.mxu0 0.0
      %1010 = vmatpush1.msra.mxu0 0.0
      %1011 = vmatprep.subr.mxu0 0.0
      %1012 = vmatpush1.msra.mxu0 0.0
      %1013 = vmatprep.subr.mxu0 0.0
      %1014 = vmatpush1.msra.mxu0 0.0
      %1015 = vmatprep.subr.mxu0 0.0
      %1016 = vmatpush1.msra.mxu0 0.0
      %1017 = vmatprep.subr.mxu0 0.0
      %1018 = vmatpush1.msra.mxu0 0.0
      %1019 = vmatprep.subr.mxu0 0.0
      %1020 = vmatpush1.msra.mxu0 0.0
      %1021 = vmatprep.subr.mxu0 0.0
      %1022 = vmatpush1.msra.mxu0 0.0
      %1023 = vmatprep.subr.mxu0 0.0
      %1024 = vmatpush1.msra.mxu0 0.0
      %1025 = vmatprep.subr.mxu0 0.0
      %1026 = vmatpush1.msra.mxu0 0.0
      %1027 = vmatprep.subr.mxu0 0.0
      %1028 = vmatpush1.msra.mxu0 0.0
      %1029 = vmatprep.subr.mxu0 0.0
      %1030 = vmatpush1.msra.mxu0 0.0
      %1031 = vmatprep.subr.mxu0 0.0
      %1032 = vmatpush1.msra.mxu0 0.0
      %1033 = vmatprep.subr.mxu0 0.0
      %1034 = vmatpush1.msra.mxu0 %v927
      %1035 = vmatprep.subr.mxu0 0.0
      %1036 = vmatpush1.msra.mxu0 %v926
      %1037 = vmatprep.subr.mxu0 0.0
      %1038 = vmatpush1.msra.mxu0 %v925
      %1039 = vmatprep.subr.mxu0 0.0
      %1040 = vmatpush1.msra.mxu0 %v924
      %1041 = vmatprep.subr.mxu0 0.0
      %1042 = vmatpush2.msra.mxu0 0.0
      %1043 = vmatprep.subr.mxu0 0.0
      %1044 = vmatpush2.msra.mxu0 0.0
      %1045 = vmatprep.subr.mxu0 0.0
      %1046 = vmatpush2.msra.mxu0 0.0
      %1047 = vmatprep.subr.mxu0 0.0
      %1048 = vmatpush2.msra.mxu0 0.0
      %1049 = vmatprep.subr.mxu0 0.0
      %1050 = vmatpush2.msra.mxu0 0.0
      %1051 = vmatprep.subr.mxu0 0.0
      %1052 = vmatpush2.msra.mxu0 0.0
      %1053 = vmatprep.subr.mxu0 0.0
      %1054 = vmatpush2.msra.mxu0 0.0
      %1055 = vmatprep.subr.mxu0 0.0
      %1056 = vmatpush2.msra.mxu0 0.0
      %1057 = vmatprep.subr.mxu0 0.0
      %1058 = vmatpush2.msra.mxu0 0.0
      %1059 = vmatprep.subr.mxu0 0.0
      %1060 = vmatpush2.msra.mxu0 0.0
      %1061 = vmatprep.subr.mxu0 0.0
      %1062 = vmatpush2.msra.mxu0 0.0
      %1063 = vmatprep.subr.mxu0 0.0
      %1064 = vmatpush2.msra.mxu0 0.0
      %1065 = vmatprep.subr.mxu0 0.0
      %1066 = vmatpush2.msra.mxu0 0.0
      %1067 = vmatprep.subr.mxu0 0.0
      %1068 = vmatpush2.msra.mxu0 0.0
      %1069 = vmatprep.subr.mxu0 0.0
      %1070 = vmatpush2.msra.mxu0 0.0
      %1071 = vmatprep.subr.mxu0 0.0
      %1072 = vmatpush2.msra.mxu0 0.0
      %1073 = vmatprep.mubr.f32.mxu0 0.0
      %1074 = vmatmul.mubr.f32.gmra.mxu0 %v1007
      %v1075 = vpop.f32.mrf.mxu0
      %v1076 = vadd.f32 %v1004, %v1075
      %v1077 = vpop.f32.mrf.mxu0
      %1078 = vdwg.mxu0
      %v1079 = vld [vmem:[#allocation5] sm:$0x1]
      %v1081 = vlaneseq
      %v1082 = vshrl.u32 %v1081, 7
      %v1083 = vsub.s32 0, %v1082
      %v1084 = vrot.slane %v1079, %v1083
      %v1086 = vadd.f32 %v1076, %v1084
      %v1087 = vmul.f32 %v1086, 0.5
      %v1088 = vtanh.pop %v1087
      %v1089 = vadd.f32 %v1088, 1.0
      %v1090 = vmul.f32 %v1089, 0.5
      %vm1091 = vcmask 7168
      %1092 = vst.msk [vmem:[%s9] sm:$0xff] %vm1091, %v1090
    $region49: #{tpu_custom_call.1} parent=1 // pred_fallthru
      _
    // Predicated region
    $region50: #{tpu_custom_call.1} parent=1 // pred_check
      _
    $region51: #{tpu_custom_call.1} parent=1 // pred_check_branch
      %1094 = sbr.rel (0) target = $region53
    $region52: #{tpu_custom_call.1} parent=1 // pred_region
      _
    $region53: #{tpu_custom_call.1} parent=1 // pred_fallthru
      _
    // Predicated region
    $region54: #{tpu_custom_call.1} parent=1 // pred_check
      _
    $region55: #{tpu_custom_call.1} parent=1 // pred_check_branch
      %1096 = sbr.rel (0) target = $region57
    $region56: #{tpu_custom_call.1} parent=1 // pred_region
      _
    $region57: #{tpu_custom_call.1} parent=1 // pred_fallthru
      _
    %1097 = vsyncpa [#allocation7], 1

</llo_original>
